<compile_context>
chip_gen: v6e
topology: v6e:2x2x1
jax: 0.10.0
libtpu: 0.0.40
codegen_flags: <defaults>
</compile_context>

<pallas_src>
import functools

import jax
import jax.numpy as jnp
from jax.experimental import pallas as pl
from jax.experimental.pallas import tpu as pltpu


IN_DIM = 99       # positional-encoding input dim (nn.Linear(99, 64))
IN_PAD = 128      # K padded to one full lane width
HID = 64          # hidden width
OUT_DIM = 4       # rgb + sigma
PACK = 2          # 2-way lane packing of the batch

H2 = PACK * HID      # 128  packed hidden width
K2 = PACK * IN_PAD   # 256  packed input width


def _round_up(n, m):
    return ((n + m - 1) // m) * m


def _cdiv(a, b):
    return -(-a // b)


def _block_diag2(w):
    """[[w, 0], [0, w]] — applies w independently to each packed batch half."""
    z = jnp.zeros_like(w)
    return jnp.block([[w, z], [z, w]])


def _nerf_kernel(num_layers,
                 x_ref,                  # (TMh, 256) bf16 : [x half0 | x half1]
                 w_in_ref, b_in_ref,     # (256, 256) bf16, (1, 128) f32
                 w_d_ref, b_d_ref,       # (128, 128) bf16, (1, 128) f32
                 w_ra_ref, b_r_ref,      # (128, 128) bf16, (1, 128) f32
                 w_out_ref, b_out_ref,   # (128, 128) bf16, (1, 128) f32
                 o_ref):                 # (TMh, 128) f32 (lane-dense)
    x = x_ref[...]
    tm = x.shape[0]
    cd = x.dtype

    # Fused input layer: one full-width matmul producing the packed hidden
    # state (lanes [0:128]) and the loop-invariant x @ W_reg[64:] ([128:256]).
    y = jnp.dot(x, w_in_ref[...], preferred_element_type=jnp.float32)   # (TMh, 256)
    h = jnp.maximum(y[:, :H2] + b_in_ref[...], 0.0).astype(cd)          # (TMh, 128)
    x_reg = y[:, H2:]                                                    # (TMh, 128) f32

    # Hoisted explicit broadcasts of the reused biases (JAX does not CSE
    # broadcast_in_dim across the unrolled layer loop).
    b_d = jnp.broadcast_to(b_d_ref[...], (tm, H2))
    b_r = jnp.broadcast_to(b_r_ref[...], (tm, H2))

    # num_layers iterations of the *shared* dense layer (same weights reused),
    # with the shared regulate (skip) layer at i % 4 == 0, i > 0.
    # (Fully unrolled: fine for num_layers ~ 8.)
    for i in range(num_layers):
        d = jnp.dot(h, w_d_ref[...], preferred_element_type=jnp.float32)
        h = jnp.maximum(d + b_d, 0.0).astype(cd)          # fused add + ReLU + downcast
        if i % 4 == 0 and i > 0:
            # cat([out, x]) @ W_reg  ==  out @ W_reg[:64] + x @ W_reg[64:]
            r = jnp.dot(h, w_ra_ref[...], preferred_element_type=jnp.float32) + x_reg
            h = jnp.maximum(r + b_r, 0.0).astype(cd)

    # Output layer against the zero-padded, block-diagonal W_out: unmasked
    # full-width store; the 4 real columns per half are sliced on the host.
    o_ref[...] = (jnp.dot(h, w_out_ref[...], preferred_element_type=jnp.float32)
                  + b_out_ref[...]).astype(o_ref.dtype)


def nerf_forward(x, params, *, num_layers, tile_m=4096, compute_dtype=jnp.bfloat16):
    """x: (N, 99) float32.  Returns (N, 4) float32."""
    N, D = x.shape
    assert D == IN_DIM
    (w_in, b_in, w_d, b_d, w_reg, b_reg, w_out, b_out) = params
    cd = compute_dtype

    # ---- weight prep: K-pad to 128, 2-way block-diagonal lane packing, bf16 ----
    w_ra = w_reg[:HID, :]                                    # (64, 64)  multiplies `out`
    w_rb = w_reg[HID:, :]                                    # (99, 64)  multiplies `x`
    w_in_p = jnp.pad(w_in, ((0, IN_PAD - IN_DIM), (0, 0)))   # (128, 64)
    w_rb_p = jnp.pad(w_rb, ((0, IN_PAD - IN_DIM), (0, 0)))   # (128, 64)

    # (256,256): cols [0:128] -> packed hidden, cols [128:256] -> packed x @ W_reg[64:]
    w_in_big = jnp.concatenate(
        [_block_diag2(w_in_p), _block_diag2(w_rb_p)], axis=1).astype(cd)
    w_d_big = _block_diag2(w_d).astype(cd)                   # (128, 128)
    w_ra_big = _block_diag2(w_ra).astype(cd)                 # (128, 128)
    w_out_p = jnp.pad(w_out, ((0, 0), (0, HID - OUT_DIM)))   # (64, 64) zero cols
    w_out_big = _block_diag2(w_out_p).astype(cd)             # (128, 128)

    b_in2 = jnp.tile(b_in, (1, PACK)).astype(jnp.float32)    # (1, 128)
    b_d2 = jnp.tile(b_d, (1, PACK)).astype(jnp.float32)
    b_r2 = jnp.tile(b_reg, (1, PACK)).astype(jnp.float32)
    b_out2 = jnp.tile(jnp.pad(b_out, ((0, 0), (0, HID - OUT_DIM))),
                      (1, PACK)).astype(jnp.float32)

    # ---- tiling over packed rows: minimal tail padding, >= 2 grid steps so
    #      both TensorCores get work on v7x (grid axis is "parallel") ----
    n0 = _round_up(max(N, 16), 16)            # both halves a multiple of 8 sublanes
    n_half0 = n0 // 2
    tile_half = max(8, (min(tile_m, 8192) // 2) // 8 * 8)
    g = max(_cdiv(n_half0, tile_half), 2 if n_half0 >= 16 else 1)
    tmh = _round_up(_cdiv(n_half0, g), 8)     # packed rows per grid step
    n_half = g * tmh
    n_pad = 2 * n_half

    # ---- pack x: rows [0:n_half] -> lanes [0:128], rows [n_half:2n_half] -> [128:256]
    x_p = jnp.pad(x, ((0, n_pad - N), (0, IN_PAD - D))).astype(cd)    # (n_pad, 128)
    x_pk = jnp.concatenate([x_p[:n_half], x_p[n_half:]], axis=1)      # (n_half, 256)

    kernel = functools.partial(_nerf_kernel, num_layers)
    full = lambda i: (0, 0)

    # Advisory cost estimate (MXU work actually issued, including zero blocks).
    n_skip = sum(1 for i in range(num_layers) if i % 4 == 0 and i > 0)
    flops = 2 * n_half * (K2 * K2 + (num_layers + n_skip + 1) * H2 * H2)
    itemsize = jnp.dtype(cd).itemsize
    w_bytes = ((w_in_big.size + w_d_big.size + w_ra_big.size + w_out_big.size)
               * itemsize
               + (b_in2.size + b_d2.size + b_r2.size + b_out2.size) * 4)
    bytes_accessed = n_half * (K2 * itemsize + H2 * 4) + w_bytes

    y = pl.pallas_call(
        kernel,
        out_shape=jax.ShapeDtypeStruct((n_half, H2), jnp.float32),
        grid_spec=pltpu.PrefetchScalarGridSpec(
            num_scalar_prefetch=0,
            grid=(g,),
            in_specs=[
                pl.BlockSpec((tmh, K2), lambda i: (i, 0)),    # x (packed)
                pl.BlockSpec((K2, K2), full),                 # w_in_big
                pl.BlockSpec((1, H2), full),                  # b_in2
                pl.BlockSpec((H2, H2), full),                 # w_d_big
                pl.BlockSpec((1, H2), full),                  # b_d2
                pl.BlockSpec((H2, H2), full),                 # w_ra_big
                pl.BlockSpec((1, H2), full),                  # b_r2
                pl.BlockSpec((H2, H2), full),                 # w_out_big
                pl.BlockSpec((1, H2), full),                  # b_out2
            ],
            out_specs=pl.BlockSpec((tmh, H2), lambda i: (i, 0)),
        ),
        compiler_params=pltpu.CompilerParams(
            dimension_semantics=("parallel",),
            vmem_limit_bytes=32 * 1024 * 1024),
        cost_estimate=pl.CostEstimate(flops=int(flops), transcendentals=0,
                                      bytes_accessed=int(bytes_accessed)),
    )(x_pk, w_in_big, b_in2, w_d_big, b_d2, w_ra_big, b_r2, w_out_big, b_out2)

    # ---- unpack: lanes [0:4] = first batch half, lanes [64:68] = second half ----
    out = jnp.concatenate([y[:, :OUT_DIM], y[:, HID:HID + OUT_DIM]], axis=0)
    return out[:N]


def init_params(key):
    """Deterministic synthetic parameters matching the module's shapes."""
    ks = jax.random.split(key, 8)

    def linear(kw, kb, fan_in, fan_out):
        bound = 1.0 / jnp.sqrt(fan_in)
        w = jax.random.uniform(kw, (fan_in, fan_out), jnp.float32, -bound, bound)
        b = jax.random.uniform(kb, (1, fan_out), jnp.float32, -bound, bound)
        return w, b

    w_in, b_in = linear(ks[0], ks[1], IN_DIM, HID)                 # Linear(99, 64)
    w_d, b_d = linear(ks[2], ks[3], HID, HID)                      # Linear(64, 64)
    w_reg, b_reg = linear(ks[4], ks[5], IN_DIM + HID, HID)         # Linear(163, 64)
    w_out, b_out = linear(ks[6], ks[7], HID, OUT_DIM)              # Linear(64, 4)
    return (w_in, b_in, w_d, b_d, w_reg, b_reg, w_out, b_out)


def nerf_forward_ref(x, params, *, num_layers, compute_dtype=jnp.bfloat16):
    """Pure-JAX reference in *unpacked* space (independent check of the packing).
    With compute_dtype=float32 it mirrors the PyTorch forward literally; with
    bfloat16 it mirrors the kernel's matmul precision (bf16 operands, f32 acc)."""
    (w_in, b_in, w_d, b_d, w_reg, b_reg, w_out, b_out) = params
    cd = compute_dtype
    xc = x.astype(cd)
    w_ra = w_reg[:HID].astype(cd)
    w_rb = w_reg[HID:].astype(cd)
    x_reg = jnp.dot(xc, w_rb, preferred_element_type=jnp.float32)
    h = jnp.dot(xc, w_in.astype(cd), preferred_element_type=jnp.float32)
    h = jnp.maximum(h + b_in, 0.0)
    for i in range(num_layers):
        h = jnp.dot(h.astype(cd), w_d.astype(cd),
                    preferred_element_type=jnp.float32)
        h = jnp.maximum(h + b_d, 0.0)
        if i % 4 == 0 and i > 0:
            reg = jnp.dot(h.astype(cd), w_ra,
                          preferred_element_type=jnp.float32) + x_reg
            h = jnp.maximum(reg + b_reg, 0.0)
    return jnp.dot(h.astype(cd), w_out.astype(cd),
                   preferred_element_type=jnp.float32) + b_out


if __name__ == "__main__":
    NUM_LAYERS = 8          # standard NeRF depth; skip at i == 4
    N = 256                 # small demo batch (tile sizing adapts automatically)

    key = jax.random.PRNGKey(0)
    k_x, k_p = jax.random.split(key)
    x = jax.random.normal(k_x, (N, IN_DIM), jnp.float32)
    params = init_params(k_p)

    y = nerf_forward(x, params, num_layers=NUM_LAYERS)
    y = jax.block_until_ready(y)

    y_ref = nerf_forward_ref(x, params, num_layers=NUM_LAYERS)
    assert y.shape == (N, OUT_DIM)
    assert jnp.allclose(y, y_ref, atol=2e-3, rtol=2e-3)

    print("KERNEL_OK")
</pallas_src>

<mosaic_0001>
module attributes {stable_mosaic.version = 11 : i64} {
  func.func @_nerf_kernel(%arg0: i32, %arg1: memref<64x256xbf16, #tpu.memory_space<vmem>>, %arg2: memref<256x256xbf16, #tpu.memory_space<vmem>>, %arg3: memref<1x128xf32, #tpu.memory_space<vmem>>, %arg4: memref<128x128xbf16, #tpu.memory_space<vmem>>, %arg5: memref<1x128xf32, #tpu.memory_space<vmem>>, %arg6: memref<128x128xbf16, #tpu.memory_space<vmem>>, %arg7: memref<1x128xf32, #tpu.memory_space<vmem>>, %arg8: memref<128x128xbf16, #tpu.memory_space<vmem>>, %arg9: memref<1x128xf32, #tpu.memory_space<vmem>>, %arg10: memref<64x128xf32, #tpu.memory_space<vmem>>) attributes {dimension_semantics = [#tpu.dimension_semantics<parallel>], iteration_bounds = array<i64: 2>, scalar_prefetch = 0 : i64, scratch_operands = 0 : i64, tpu.core_type = #tpu.core_type<tc>, window_params = [{transform_indices = @transform_0, window_bounds = array<i64: 64, 256>}, {pipeline_mode = #tpu.pipeline_mode<synchronous>, transform_indices = @transform_1, window_bounds = array<i64: 256, 256>}, {pipeline_mode = #tpu.pipeline_mode<synchronous>, transform_indices = @transform_2, window_bounds = array<i64: 1, 128>}, {pipeline_mode = #tpu.pipeline_mode<synchronous>, transform_indices = @transform_3, window_bounds = array<i64: 128, 128>}, {pipeline_mode = #tpu.pipeline_mode<synchronous>, transform_indices = @transform_4, window_bounds = array<i64: 1, 128>}, {pipeline_mode = #tpu.pipeline_mode<synchronous>, transform_indices = @transform_5, window_bounds = array<i64: 128, 128>}, {pipeline_mode = #tpu.pipeline_mode<synchronous>, transform_indices = @transform_6, window_bounds = array<i64: 1, 128>}, {pipeline_mode = #tpu.pipeline_mode<synchronous>, transform_indices = @transform_7, window_bounds = array<i64: 128, 128>}, {pipeline_mode = #tpu.pipeline_mode<synchronous>, transform_indices = @transform_8, window_bounds = array<i64: 1, 128>}, {transform_indices = @transform_9, window_bounds = array<i64: 64, 128>}]} {
    %c0 = arith.constant 0 : index
    %c0_0 = arith.constant 0 : index
    %0 = vector.load %arg1[%c0, %c0_0] : memref<64x256xbf16, #tpu.memory_space<vmem>>, vector<64x256xbf16>
    %c0_1 = arith.constant 0 : index
    %c0_2 = arith.constant 0 : index
    %1 = vector.load %arg2[%c0_1, %c0_2] : memref<256x256xbf16, #tpu.memory_space<vmem>>, vector<256x256xbf16>
    %cst = arith.constant dense<0.000000e+00> : vector<64x256xf32>
    %2 = tpu.matmul %0, %1, %cst {dimension_numbers = #tpu.dot_dimension_numbers<[1], [0], [0], [1], [0, 0, 1, 1], [], []>} : vector<64x256xbf16>, vector<256x256xbf16>, vector<64x256xf32> -> vector<64x256xf32>
    %3 = vector.extract_strided_slice %2 {offsets = [0, 0], sizes = [64, 128], strides = [1, 1]} : vector<64x256xf32> to vector<64x128xf32>
    %c0_3 = arith.constant 0 : index
    %c0_4 = arith.constant 0 : index
    %4 = vector.load %arg3[%c0_3, %c0_4] : memref<1x128xf32, #tpu.memory_space<vmem>>, vector<1x128xf32>
    %5 = vector.broadcast %4 : vector<1x128xf32> to vector<64x128xf32>
    %6 = arith.addf %3, %5 : vector<64x128xf32>
    %cst_5 = arith.constant 0.000000e+00 : f32
    %7 = vector.broadcast %cst_5 : f32 to vector<64x128xf32>
    %8 = arith.maximumf %6, %7 : vector<64x128xf32>
    %9 = arith.truncf %8 : vector<64x128xf32> to vector<64x128xbf16>
    %10 = vector.extract_strided_slice %2 {offsets = [0, 128], sizes = [64, 128], strides = [1, 1]} : vector<64x256xf32> to vector<64x128xf32>
    %c0_6 = arith.constant 0 : index
    %c0_7 = arith.constant 0 : index
    %11 = vector.load %arg5[%c0_6, %c0_7] : memref<1x128xf32, #tpu.memory_space<vmem>>, vector<1x128xf32>
    %12 = vector.shape_cast %11 : vector<1x128xf32> to vector<1x128xf32>
    %13 = vector.broadcast %12 : vector<1x128xf32> to vector<64x128xf32>
    %c0_8 = arith.constant 0 : index
    %c0_9 = arith.constant 0 : index
    %14 = vector.load %arg7[%c0_8, %c0_9] : memref<1x128xf32, #tpu.memory_space<vmem>>, vector<1x128xf32>
    %15 = vector.shape_cast %14 : vector<1x128xf32> to vector<1x128xf32>
    %16 = vector.broadcast %15 : vector<1x128xf32> to vector<64x128xf32>
    %c0_10 = arith.constant 0 : index
    %c0_11 = arith.constant 0 : index
    %17 = vector.load %arg4[%c0_10, %c0_11] : memref<128x128xbf16, #tpu.memory_space<vmem>>, vector<128x128xbf16>
    %cst_12 = arith.constant dense<0.000000e+00> : vector<64x128xf32>
    %18 = tpu.matmul %9, %17, %cst_12 {dimension_numbers = #tpu.dot_dimension_numbers<[1], [0], [0], [1], [0, 0, 1, 1], [], []>} : vector<64x128xbf16>, vector<128x128xbf16>, vector<64x128xf32> -> vector<64x128xf32>
    %19 = arith.addf %18, %13 : vector<64x128xf32>
    %cst_13 = arith.constant 0.000000e+00 : f32
    %20 = vector.broadcast %cst_13 : f32 to vector<64x128xf32>
    %21 = arith.maximumf %19, %20 : vector<64x128xf32>
    %22 = arith.truncf %21 : vector<64x128xf32> to vector<64x128xbf16>
    %c0_14 = arith.constant 0 : index
    %c0_15 = arith.constant 0 : index
    %23 = vector.load %arg4[%c0_14, %c0_15] : memref<128x128xbf16, #tpu.memory_space<vmem>>, vector<128x128xbf16>
    %cst_16 = arith.constant dense<0.000000e+00> : vector<64x128xf32>
    %24 = tpu.matmul %22, %23, %cst_16 {dimension_numbers = #tpu.dot_dimension_numbers<[1], [0], [0], [1], [0, 0, 1, 1], [], []>} : vector<64x128xbf16>, vector<128x128xbf16>, vector<64x128xf32> -> vector<64x128xf32>
    %25 = arith.addf %24, %13 : vector<64x128xf32>
    %cst_17 = arith.constant 0.000000e+00 : f32
    %26 = vector.broadcast %cst_17 : f32 to vector<64x128xf32>
    %27 = arith.maximumf %25, %26 : vector<64x128xf32>
    %28 = arith.truncf %27 : vector<64x128xf32> to vector<64x128xbf16>
    %c0_18 = arith.constant 0 : index
    %c0_19 = arith.constant 0 : index
    %29 = vector.load %arg4[%c0_18, %c0_19] : memref<128x128xbf16, #tpu.memory_space<vmem>>, vector<128x128xbf16>
    %cst_20 = arith.constant dense<0.000000e+00> : vector<64x128xf32>
    %30 = tpu.matmul %28, %29, %cst_20 {dimension_numbers = #tpu.dot_dimension_numbers<[1], [0], [0], [1], [0, 0, 1, 1], [], []>} : vector<64x128xbf16>, vector<128x128xbf16>, vector<64x128xf32> -> vector<64x128xf32>
    %31 = arith.addf %30, %13 : vector<64x128xf32>
    %cst_21 = arith.constant 0.000000e+00 : f32
    %32 = vector.broadcast %cst_21 : f32 to vector<64x128xf32>
    %33 = arith.maximumf %31, %32 : vector<64x128xf32>
    %34 = arith.truncf %33 : vector<64x128xf32> to vector<64x128xbf16>
    %c0_22 = arith.constant 0 : index
    %c0_23 = arith.constant 0 : index
    %35 = vector.load %arg4[%c0_22, %c0_23] : memref<128x128xbf16, #tpu.memory_space<vmem>>, vector<128x128xbf16>
    %cst_24 = arith.constant dense<0.000000e+00> : vector<64x128xf32>
    %36 = tpu.matmul %34, %35, %cst_24 {dimension_numbers = #tpu.dot_dimension_numbers<[1], [0], [0], [1], [0, 0, 1, 1], [], []>} : vector<64x128xbf16>, vector<128x128xbf16>, vector<64x128xf32> -> vector<64x128xf32>
    %37 = arith.addf %36, %13 : vector<64x128xf32>
    %cst_25 = arith.constant 0.000000e+00 : f32
    %38 = vector.broadcast %cst_25 : f32 to vector<64x128xf32>
    %39 = arith.maximumf %37, %38 : vector<64x128xf32>
    %40 = arith.truncf %39 : vector<64x128xf32> to vector<64x128xbf16>
    %c0_26 = arith.constant 0 : index
    %c0_27 = arith.constant 0 : index
    %41 = vector.load %arg4[%c0_26, %c0_27] : memref<128x128xbf16, #tpu.memory_space<vmem>>, vector<128x128xbf16>
    %cst_28 = arith.constant dense<0.000000e+00> : vector<64x128xf32>
    %42 = tpu.matmul %40, %41, %cst_28 {dimension_numbers = #tpu.dot_dimension_numbers<[1], [0], [0], [1], [0, 0, 1, 1], [], []>} : vector<64x128xbf16>, vector<128x128xbf16>, vector<64x128xf32> -> vector<64x128xf32>
    %43 = arith.addf %42, %13 : vector<64x128xf32>
    %cst_29 = arith.constant 0.000000e+00 : f32
    %44 = vector.broadcast %cst_29 : f32 to vector<64x128xf32>
    %45 = arith.maximumf %43, %44 : vector<64x128xf32>
    %46 = arith.truncf %45 : vector<64x128xf32> to vector<64x128xbf16>
    %c0_30 = arith.constant 0 : index
    %c0_31 = arith.constant 0 : index
    %47 = vector.load %arg6[%c0_30, %c0_31] : memref<128x128xbf16, #tpu.memory_space<vmem>>, vector<128x128xbf16>
    %cst_32 = arith.constant dense<0.000000e+00> : vector<64x128xf32>
    %48 = tpu.matmul %46, %47, %cst_32 {dimension_numbers = #tpu.dot_dimension_numbers<[1], [0], [0], [1], [0, 0, 1, 1], [], []>} : vector<64x128xbf16>, vector<128x128xbf16>, vector<64x128xf32> -> vector<64x128xf32>
    %49 = arith.addf %48, %10 : vector<64x128xf32>
    %50 = arith.addf %49, %16 : vector<64x128xf32>
    %cst_33 = arith.constant 0.000000e+00 : f32
    %51 = vector.broadcast %cst_33 : f32 to vector<64x128xf32>
    %52 = arith.maximumf %50, %51 : vector<64x128xf32>
    %53 = arith.truncf %52 : vector<64x128xf32> to vector<64x128xbf16>
    %c0_34 = arith.constant 0 : index
    %c0_35 = arith.constant 0 : index
    %54 = vector.load %arg4[%c0_34, %c0_35] : memref<128x128xbf16, #tpu.memory_space<vmem>>, vector<128x128xbf16>
    %cst_36 = arith.constant dense<0.000000e+00> : vector<64x128xf32>
    %55 = tpu.matmul %53, %54, %cst_36 {dimension_numbers = #tpu.dot_dimension_numbers<[1], [0], [0], [1], [0, 0, 1, 1], [], []>} : vector<64x128xbf16>, vector<128x128xbf16>, vector<64x128xf32> -> vector<64x128xf32>
    %56 = arith.addf %55, %13 : vector<64x128xf32>
    %cst_37 = arith.constant 0.000000e+00 : f32
    %57 = vector.broadcast %cst_37 : f32 to vector<64x128xf32>
    %58 = arith.maximumf %56, %57 : vector<64x128xf32>
    %59 = arith.truncf %58 : vector<64x128xf32> to vector<64x128xbf16>
    %c0_38 = arith.constant 0 : index
    %c0_39 = arith.constant 0 : index
    %60 = vector.load %arg4[%c0_38, %c0_39] : memref<128x128xbf16, #tpu.memory_space<vmem>>, vector<128x128xbf16>
    %cst_40 = arith.constant dense<0.000000e+00> : vector<64x128xf32>
    %61 = tpu.matmul %59, %60, %cst_40 {dimension_numbers = #tpu.dot_dimension_numbers<[1], [0], [0], [1], [0, 0, 1, 1], [], []>} : vector<64x128xbf16>, vector<128x128xbf16>, vector<64x128xf32> -> vector<64x128xf32>
    %62 = arith.addf %61, %13 : vector<64x128xf32>
    %cst_41 = arith.constant 0.000000e+00 : f32
    %63 = vector.broadcast %cst_41 : f32 to vector<64x128xf32>
    %64 = arith.maximumf %62, %63 : vector<64x128xf32>
    %65 = arith.truncf %64 : vector<64x128xf32> to vector<64x128xbf16>
    %c0_42 = arith.constant 0 : index
    %c0_43 = arith.constant 0 : index
    %66 = vector.load %arg4[%c0_42, %c0_43] : memref<128x128xbf16, #tpu.memory_space<vmem>>, vector<128x128xbf16>
    %cst_44 = arith.constant dense<0.000000e+00> : vector<64x128xf32>
    %67 = tpu.matmul %65, %66, %cst_44 {dimension_numbers = #tpu.dot_dimension_numbers<[1], [0], [0], [1], [0, 0, 1, 1], [], []>} : vector<64x128xbf16>, vector<128x128xbf16>, vector<64x128xf32> -> vector<64x128xf32>
    %68 = arith.addf %67, %13 : vector<64x128xf32>
    %cst_45 = arith.constant 0.000000e+00 : f32
    %69 = vector.broadcast %cst_45 : f32 to vector<64x128xf32>
    %70 = arith.maximumf %68, %69 : vector<64x128xf32>
    %71 = arith.truncf %70 : vector<64x128xf32> to vector<64x128xbf16>
    %c0_46 = arith.constant 0 : index
    %c0_47 = arith.constant 0 : index
    %72 = vector.load %arg8[%c0_46, %c0_47] : memref<128x128xbf16, #tpu.memory_space<vmem>>, vector<128x128xbf16>
    %cst_48 = arith.constant dense<0.000000e+00> : vector<64x128xf32>
    %73 = tpu.matmul %71, %72, %cst_48 {dimension_numbers = #tpu.dot_dimension_numbers<[1], [0], [0], [1], [0, 0, 1, 1], [], []>} : vector<64x128xbf16>, vector<128x128xbf16>, vector<64x128xf32> -> vector<64x128xf32>
    %c0_49 = arith.constant 0 : index
    %c0_50 = arith.constant 0 : index
    %74 = vector.load %arg9[%c0_49, %c0_50] : memref<1x128xf32, #tpu.memory_space<vmem>>, vector<1x128xf32>
    %75 = vector.broadcast %74 : vector<1x128xf32> to vector<64x128xf32>
    %76 = arith.addf %73, %75 : vector<64x128xf32>
    %c0_51 = arith.constant 0 : index
    %c0_52 = arith.constant 0 : index
    %77 = vector.load %arg10[%c0_51, %c0_52] : memref<64x128xf32, #tpu.memory_space<vmem>>, vector<64x128xf32>
    tpu.vector_store %arg10[%c0_51, %c0_52], %76 {strides = array<i32>} : memref<64x128xf32, #tpu.memory_space<vmem>>, vector<64x128xf32>,
    return
  }
  func.func @transform_0(%arg0: i32) -> (i32, i32) {
    %c0_i32 = arith.constant 0 : i32
    %c0_i32_0 = arith.constant 0 : i32
    return %arg0, %c0_i32 : i32, i32
  }
  func.func @transform_1(%arg0: i32) -> (i32, i32) {
    %c0_i32 = arith.constant 0 : i32
    %c0_i32_0 = arith.constant 0 : i32
    %c0_i32_1 = arith.constant 0 : i32
    return %c0_i32, %c0_i32_0 : i32, i32
  }
  func.func @transform_2(%arg0: i32) -> (i32, i32) {
    %c0_i32 = arith.constant 0 : i32
    %c0_i32_0 = arith.constant 0 : i32
    %c0_i32_1 = arith.constant 0 : i32
    return %c0_i32, %c0_i32_0 : i32, i32
  }
  func.func @transform_3(%arg0: i32) -> (i32, i32) {
    %c0_i32 = arith.constant 0 : i32
    %c0_i32_0 = arith.constant 0 : i32
    %c0_i32_1 = arith.constant 0 : i32
    return %c0_i32, %c0_i32_0 : i32, i32
  }
  func.func @transform_4(%arg0: i32) -> (i32, i32) {
    %c0_i32 = arith.constant 0 : i32
    %c0_i32_0 = arith.constant 0 : i32
    %c0_i32_1 = arith.constant 0 : i32
    return %c0_i32, %c0_i32_0 : i32, i32
  }
  func.func @transform_5(%arg0: i32) -> (i32, i32) {
    %c0_i32 = arith.constant 0 : i32
    %c0_i32_0 = arith.constant 0 : i32
    %c0_i32_1 = arith.constant 0 : i32
    return %c0_i32, %c0_i32_0 : i32, i32
  }
  func.func @transform_6(%arg0: i32) -> (i32, i32) {
    %c0_i32 = arith.constant 0 : i32
    %c0_i32_0 = arith.constant 0 : i32
    %c0_i32_1 = arith.constant 0 : i32
    return %c0_i32, %c0_i32_0 : i32, i32
  }
  func.func @transform_7(%arg0: i32) -> (i32, i32) {
    %c0_i32 = arith.constant 0 : i32
    %c0_i32_0 = arith.constant 0 : i32
    %c0_i32_1 = arith.constant 0 : i32
    return %c0_i32, %c0_i32_0 : i32, i32
  }
  func.func @transform_8(%arg0: i32) -> (i32, i32) {
    %c0_i32 = arith.constant 0 : i32
    %c0_i32_0 = arith.constant 0 : i32
    %c0_i32_1 = arith.constant 0 : i32
    return %c0_i32, %c0_i32_0 : i32, i32
  }
  func.func @transform_9(%arg0: i32) -> (i32, i32) {
    %c0_i32 = arith.constant 0 : i32
    %c0_i32_0 = arith.constant 0 : i32
    return %arg0, %c0_i32 : i32, i32
  }
}

</mosaic_0001>

<llo_original>
// kernel: tpu_custom_call.1
$region0: #{tpu_custom_call.1}
  #allocation0 [shape = 'u32[]', space=smem, size = 0x4, offset = 0x4, fixed_abs, tag = 'smem constant byte address 0x4 - core index']
  #allocation1 [shape = 'u32[144,128]{1,0:T(1,128)}', space=vmem, size = 0x12000, scoped, tag = 'internal scratch']
  %s0 = inlined_call_operand.hbm [shape: bf16[128,256], index: 0, kind: input, shape index: {}]
  %s1 = inlined_call_operand.hbm [shape: bf16[256,256], index: 1, kind: input, shape index: {}]
  %s2 = inlined_call_operand.vmem [shape: f32[1,128], index: 2, kind: input, shape index: {}]
  %s3 = inlined_call_operand.hbm [shape: bf16[128,128], index: 3, kind: input, shape index: {}]
  %s4 = inlined_call_operand.vmem [shape: f32[1,128], index: 4, kind: input, shape index: {}]
  %s5 = inlined_call_operand.hbm [shape: bf16[128,128], index: 5, kind: input, shape index: {}]
  %s6 = inlined_call_operand.vmem [shape: f32[1,128], index: 6, kind: input, shape index: {}]
  %s7 = inlined_call_operand.hbm [shape: bf16[128,128], index: 7, kind: input, shape index: {}]
  %s8 = inlined_call_operand.vmem [shape: f32[1,128], index: 8, kind: input, shape index: {}]
  %s9 = inlined_call_operand.hbm [shape: f32[128,128], index: 9, kind: output, shape index: {}]
  %s10 = sld [smem:[#allocation0]]
  $region89: #{tpu_custom_call.1} parent=0
    _
  %s12 = ssub.s32 1, %s10
  %s13 = scalar_select 0, %s12, %s10
  $region1: #{tpu_custom_call.1} parent=0
    #allocation2 [shape = 'u8[65536]{0}', space=vmem, size = 0x10000, scoped, tag = 'input window, operand 0']
    #allocation3 [shape = 's32[2]{0}', space=sflag, size = 0x8, scoped, tag = 'scoped memory for tpu_custom_call.1']
    #allocation4 [shape = 's32[2]{0}', space=sflag, size = 0x8, scoped, tag = 'scoped memory for tpu_custom_call.1']
    #allocation5 [shape = 'u8[131072]{0}', space=vmem, size = 0x20000, scoped, tag = 'input window, operand 1, single buffered']
    #allocation6 [shape = 's32[1]{0}', space=sflag, size = 0x4, scoped, tag = 'scoped memory for tpu_custom_call.1']
    #allocation7 [shape = 'u8[32768]{0}', space=vmem, size = 0x8000, scoped, tag = 'input window, operand 3, single buffered']
    #allocation8 [shape = 'u8[32768]{0}', space=vmem, size = 0x8000, scoped, tag = 'input window, operand 5, single buffered']
    #allocation9 [shape = 's32[1]{0}', space=sflag, size = 0x4, scoped, tag = 'scoped memory for tpu_custom_call.1']
    #allocation10 [shape = 'u8[32768]{0}', space=vmem, size = 0x8000, scoped, tag = 'input window, operand 7, single buffered']
    #allocation11 [shape = 'u8[65536]{0}', space=vmem, size = 0x10000, scoped, tag = 'output window, operand 0']
    %14 = vsyncpa [#allocation3], 0
    %s15 = scalar_lea.sflag [#allocation3], 1
    %16 = vsyncpa %s15, 0
    %17 = vsyncpa [#allocation6], 0
    %18 = vsyncpa [#allocation9], 0
    %19 = vsyncpa [#allocation4], 0
    %s20 = scalar_lea.sflag [#allocation4], 1
    %21 = vsyncpa %s20, 0
    loop: start=0, step=1, limit=4
    $region2: #{tpu_custom_call.1} parent=1 // loop_pre_header
      _
    $region3: #{tpu_custom_call.1} parent=1 // loop_header
      %s23 = sphi 0, %s27
      %p24 = scmp.ge.s32.totalorder %s23, 4
      %s33 = sphi 0, %s35
      %s36 = sphi 0, %s33
      %s37 = sphi 0, %s36
      %s53 = sphi 0, %s37
      %s57 = sphi 0, %s57
      %s59 = sphi 0, %s57
      %s60 = sphi 0, %s59
      %s74 = sphi 0, %s60
      %s78 = sphi 0, %s78
      %s80 = sphi 0, %s78
      %s81 = sphi 0, %s80
      %s95 = sphi 0, %s81
      %s99 = sphi 0, %s99
      %s101 = sphi 0, %s99
      %s102 = sphi 0, %s101
      %s116 = sphi 0, %s102
      %s120 = sphi 0, %s120
      %s122 = sphi 0, %s120
      %s123 = sphi 0, %s122
      %s137 = sphi 0, %s123
      %s141 = sphi 0, %s141
      %s143 = sphi 0, %s141
      %s144 = sphi 0, %s143
      %s158 = sphi 0, %s144
      %s162 = sphi 0, %s162
      %s164 = sphi 0, %s162
      %s165 = sphi 0, %s164
      %s179 = sphi 0, %s165
      %s183 = sphi 0, %s183
      %s185 = sphi 0, %s183
      %s186 = sphi 0, %s185
      %s200 = sphi 0, %s186
      %s204 = sphi 0, %s204
      %s206 = sphi 0, %s204
      %s207 = sphi 0, %s206
      %s221 = sphi 0, %s207
      %s227 = sphi 0, %s229
      %s230 = sphi 0, %s227
      %s231 = sphi 0, %s230
      %s247 = sphi 0, %s231
    $region4: #{tpu_custom_call.1} parent=1 // loop_header_branch
      %26 = sbr.rel (%p24) target = $region8
    $region5: #{tpu_custom_call.1} parent=1 // loop_body
      %s28 = ssub.s32 %s23, 1
      %s29 = ssub.s32 %s23, 2
      %s30 = sadd.s32 %s23, 1
      %s31 = ssub.s32 %s23, %s30
      %p32 = scmp.eq.s32.totalorder %s31, 0
      %s34 = sadd.s32 %s33, 1
      %s35 = scalar_select %p32, %s33, %s34
      %p38 = pneg %p32
      %p39 = scmp.eq.s32.totalorder %s23, 1
      %p40 = por %p38, %p39
      %p41 = scmp.ne.s32.totalorder %s33, %s36
      %p42 = scmp.eq.s32.totalorder %s23, 0
      %p43 = por %p41, %p42
      %p44 = scmp.ne.s32.totalorder %s33, %s36
      %p45 = scmp.eq.s32.totalorder %s28, 1
      %p46 = por %p44, %p45
      %p47 = scmp.ne.s32.totalorder %s36, %s37
      %p48 = scmp.eq.s32.totalorder %s28, 0
      %p49 = por %p47, %p48
      %p50 = scmp.ne.s32.totalorder %s36, %s37
      %p51 = scmp.eq.s32.totalorder %s29, 1
      %p52 = por %p50, %p51
      %p54 = scmp.ne.s32.totalorder %s37, %s53
      %p55 = scmp.eq.s32.totalorder %s29, 0
      %p56 = por %p54, %p55
      %s58 = sadd.s32 %s57, 1
      %p61 = scmp.eq.s32.totalorder %s23, 1
      %p62 = scmp.ne.s32.totalorder %s57, %s59
      %p63 = scmp.eq.s32.totalorder %s23, 0
      %p64 = por %p62, %p63
      %p65 = scmp.ne.s32.totalorder %s57, %s59
      %p66 = scmp.eq.s32.totalorder %s28, 1
      %p67 = por %p65, %p66
      %p68 = scmp.ne.s32.totalorder %s59, %s60
      %p69 = scmp.eq.s32.totalorder %s28, 0
      %p70 = por %p68, %p69
      %p71 = scmp.ne.s32.totalorder %s59, %s60
      %p72 = scmp.eq.s32.totalorder %s29, 1
      %p73 = por %p71, %p72
      %p75 = scmp.ne.s32.totalorder %s60, %s74
      %p76 = scmp.eq.s32.totalorder %s29, 0
      %p77 = por %p75, %p76
      %s79 = sadd.s32 %s78, 1
      %p82 = scmp.eq.s32.totalorder %s23, 1
      %p83 = scmp.ne.s32.totalorder %s78, %s80
      %p84 = scmp.eq.s32.totalorder %s23, 0
      %p85 = por %p83, %p84
      %p86 = scmp.ne.s32.totalorder %s78, %s80
      %p87 = scmp.eq.s32.totalorder %s28, 1
      %p88 = por %p86, %p87
      %p89 = scmp.ne.s32.totalorder %s80, %s81
      %p90 = scmp.eq.s32.totalorder %s28, 0
      %p91 = por %p89, %p90
      %p92 = scmp.ne.s32.totalorder %s80, %s81
      %p93 = scmp.eq.s32.totalorder %s29, 1
      %p94 = por %p92, %p93
      %p96 = scmp.ne.s32.totalorder %s81, %s95
      %p97 = scmp.eq.s32.totalorder %s29, 0
      %p98 = por %p96, %p97
      %s100 = sadd.s32 %s99, 1
      %p103 = scmp.eq.s32.totalorder %s23, 1
      %p104 = scmp.ne.s32.totalorder %s99, %s101
      %p105 = scmp.eq.s32.totalorder %s23, 0
      %p106 = por %p104, %p105
      %p107 = scmp.ne.s32.totalorder %s99, %s101
      %p108 = scmp.eq.s32.totalorder %s28, 1
      %p109 = por %p107, %p108
      %p110 = scmp.ne.s32.totalorder %s101, %s102
      %p111 = scmp.eq.s32.totalorder %s28, 0
      %p112 = por %p110, %p111
      %p113 = scmp.ne.s32.totalorder %s101, %s102
      %p114 = scmp.eq.s32.totalorder %s29, 1
      %p115 = por %p113, %p114
      %p117 = scmp.ne.s32.totalorder %s102, %s116
      %p118 = scmp.eq.s32.totalorder %s29, 0
      %p119 = por %p117, %p118
      %s121 = sadd.s32 %s120, 1
      %p124 = scmp.eq.s32.totalorder %s23, 1
      %p125 = scmp.ne.s32.totalorder %s120, %s122
      %p126 = scmp.eq.s32.totalorder %s23, 0
      %p127 = por %p125, %p126
      %p128 = scmp.ne.s32.totalorder %s120, %s122
      %p129 = scmp.eq.s32.totalorder %s28, 1
      %p130 = por %p128, %p129
      %p131 = scmp.ne.s32.totalorder %s122, %s123
      %p132 = scmp.eq.s32.totalorder %s28, 0
      %p133 = por %p131, %p132
      %p134 = scmp.ne.s32.totalorder %s122, %s123
      %p135 = scmp.eq.s32.totalorder %s29, 1
      %p136 = por %p134, %p135
      %p138 = scmp.ne.s32.totalorder %s123, %s137
      %p139 = scmp.eq.s32.totalorder %s29, 0
      %p140 = por %p138, %p139
      %s142 = sadd.s32 %s141, 1
      %p145 = scmp.eq.s32.totalorder %s23, 1
      %p146 = scmp.ne.s32.totalorder %s141, %s143
      %p147 = scmp.eq.s32.totalorder %s23, 0
      %p148 = por %p146, %p147
      %p149 = scmp.ne.s32.totalorder %s141, %s143
      %p150 = scmp.eq.s32.totalorder %s28, 1
      %p151 = por %p149, %p150
      %p152 = scmp.ne.s32.totalorder %s143, %s144
      %p153 = scmp.eq.s32.totalorder %s28, 0
      %p154 = por %p152, %p153
      %p155 = scmp.ne.s32.totalorder %s143, %s144
      %p156 = scmp.eq.s32.totalorder %s29, 1
      %p157 = por %p155, %p156
      %p159 = scmp.ne.s32.totalorder %s144, %s158
      %p160 = scmp.eq.s32.totalorder %s29, 0
      %p161 = por %p159, %p160
      %s163 = sadd.s32 %s162, 1
      %p166 = scmp.eq.s32.totalorder %s23, 1
      %p167 = scmp.ne.s32.totalorder %s162, %s164
      %p168 = scmp.eq.s32.totalorder %s23, 0
      %p169 = por %p167, %p168
      %p170 = scmp.ne.s32.totalorder %s162, %s164
      %p171 = scmp.eq.s32.totalorder %s28, 1
      %p172 = por %p170, %p171
      %p173 = scmp.ne.s32.totalorder %s164, %s165
      %p174 = scmp.eq.s32.totalorder %s28, 0
      %p175 = por %p173, %p174
      %p176 = scmp.ne.s32.totalorder %s164, %s165
      %p177 = scmp.eq.s32.totalorder %s29, 1
      %p178 = por %p176, %p177
      %p180 = scmp.ne.s32.totalorder %s165, %s179
      %p181 = scmp.eq.s32.totalorder %s29, 0
      %p182 = por %p180, %p181
      %s184 = sadd.s32 %s183, 1
      %p187 = scmp.eq.s32.totalorder %s23, 1
      %p188 = scmp.ne.s32.totalorder %s183, %s185
      %p189 = scmp.eq.s32.totalorder %s23, 0
      %p190 = por %p188, %p189
      %p191 = scmp.ne.s32.totalorder %s183, %s185
      %p192 = scmp.eq.s32.totalorder %s28, 1
      %p193 = por %p191, %p192
      %p194 = scmp.ne.s32.totalorder %s185, %s186
      %p195 = scmp.eq.s32.totalorder %s28, 0
      %p196 = por %p194, %p195
      %p197 = scmp.ne.s32.totalorder %s185, %s186
      %p198 = scmp.eq.s32.totalorder %s29, 1
      %p199 = por %p197, %p198
      %p201 = scmp.ne.s32.totalorder %s186, %s200
      %p202 = scmp.eq.s32.totalorder %s29, 0
      %p203 = por %p201, %p202
      %s205 = sadd.s32 %s204, 1
      %p208 = scmp.eq.s32.totalorder %s23, 1
      %p209 = scmp.ne.s32.totalorder %s204, %s206
      %p210 = scmp.eq.s32.totalorder %s23, 0
      %p211 = por %p209, %p210
      %p212 = scmp.ne.s32.totalorder %s204, %s206
      %p213 = scmp.eq.s32.totalorder %s28, 1
      %p214 = por %p212, %p213
      %p215 = scmp.ne.s32.totalorder %s206, %s207
      %p216 = scmp.eq.s32.totalorder %s28, 0
      %p217 = por %p215, %p216
      %p218 = scmp.ne.s32.totalorder %s206, %s207
      %p219 = scmp.eq.s32.totalorder %s29, 1
      %p220 = por %p218, %p219
      %p222 = scmp.ne.s32.totalorder %s207, %s221
      %p223 = scmp.eq.s32.totalorder %s29, 0
      %p224 = por %p222, %p223
      %s225 = ssub.s32 %s23, %s30
      %p226 = scmp.eq.s32.totalorder %s225, 0
      %s228 = sadd.s32 %s227, 1
      %s229 = scalar_select %p226, %s227, %s228
      %p232 = pneg %p226
      %p233 = scmp.eq.s32.totalorder %s23, 1
      %p234 = por %p232, %p233
      %p235 = scmp.ne.s32.totalorder %s227, %s230
      %p236 = scmp.eq.s32.totalorder %s23, 0
      %p237 = por %p235, %p236
      %p238 = scmp.ne.s32.totalorder %s227, %s230
      %p239 = scmp.eq.s32.totalorder %s28, 1
      %p240 = por %p238, %p239
      %p241 = scmp.ne.s32.totalorder %s230, %s231
      %p242 = scmp.eq.s32.totalorder %s28, 0
      %p243 = por %p241, %p242
      %p244 = scmp.ne.s32.totalorder %s230, %s231
      %p245 = scmp.eq.s32.totalorder %s29, 1
      %p246 = por %p244, %p245
      %p248 = scmp.ne.s32.totalorder %s231, %s247
      %p249 = scmp.eq.s32.totalorder %s29, 0
      %p250 = por %p248, %p249
      %p251 = scmp.le.s32.totalorder 1, %s23
      %p252 = scmp.lt.s32.totalorder %s23, 3
      %p253 = pnand %p251, %p252
      %p254 = pneg %p253
      // Predicated region
      $region9: #{tpu_custom_call.1} parent=5 // pred_check
        _
      $region10: #{tpu_custom_call.1} parent=5 // pred_check_branch
        %256 = sbr.rel (%p253) target = $region12
      $region11: #{tpu_custom_call.1} parent=5 // pred_region
        %s257 = ssub.s32 %s23, 1
        // Predicated region
        $region13: #{tpu_custom_call.1} parent=11 // pred_check
          %p258 = pneg %p70
        $region14: #{tpu_custom_call.1} parent=11 // pred_check_branch
          %260 = sbr.rel (%p258) target = $region16
        $region15: #{tpu_custom_call.1} parent=11 // pred_region
          %s262 = ssub.s32 4096, 4096
          %263 = vsyncadd [#allocation6], %s262
          %s264 = sshll.u32 [#allocation5], 4
          %s265 = int_to_ptr.vmem [resolvable:$true] %s264
          %270 = dma.hbm_to_vmem [thread:$0]  %s1, 4096, %s265, [#allocation6], 128, 128, 8
        $region16: #{tpu_custom_call.1} parent=11 // pred_fallthru
          _
        // Predicated region
        $region17: #{tpu_custom_call.1} parent=11 // pred_check
          %p271 = pneg %p91
        $region18: #{tpu_custom_call.1} parent=11 // pred_check_branch
          %273 = sbr.rel (%p271) target = $region20
        $region19: #{tpu_custom_call.1} parent=11 // pred_region
          _
        $region20: #{tpu_custom_call.1} parent=11 // pred_fallthru
          _
        // Predicated region
        $region21: #{tpu_custom_call.1} parent=11 // pred_check
          %p274 = pneg %p112
        $region22: #{tpu_custom_call.1} parent=11 // pred_check_branch
          %276 = sbr.rel (%p274) target = $region24
        $region23: #{tpu_custom_call.1} parent=11 // pred_region
          %s278 = ssub.s32 1024, 1024
          %279 = vsyncadd [#allocation6], %s278
          %s280 = sshll.u32 [#allocation7], 4
          %s281 = int_to_ptr.vmem [resolvable:$true] %s280
          %286 = dma.hbm_to_vmem [thread:$0]  %s3, 1024, %s281, [#allocation6], 64, 64, 4
        $region24: #{tpu_custom_call.1} parent=11 // pred_fallthru
          _
        // Predicated region
        $region25: #{tpu_custom_call.1} parent=11 // pred_check
          %p287 = pneg %p133
        $region26: #{tpu_custom_call.1} parent=11 // pred_check_branch
          %289 = sbr.rel (%p287) target = $region28
        $region27: #{tpu_custom_call.1} parent=11 // pred_region
          _
        $region28: #{tpu_custom_call.1} parent=11 // pred_fallthru
          _
        // Predicated region
        $region29: #{tpu_custom_call.1} parent=11 // pred_check
          %p290 = pneg %p154
        $region30: #{tpu_custom_call.1} parent=11 // pred_check_branch
          %292 = sbr.rel (%p290) target = $region32
        $region31: #{tpu_custom_call.1} parent=11 // pred_region
          %s294 = ssub.s32 1024, 1024
          %295 = vsyncadd [#allocation9], %s294
          %s296 = sshll.u32 [#allocation8], 4
          %s297 = int_to_ptr.vmem [resolvable:$true] %s296
          %302 = dma.hbm_to_vmem [thread:$0]  %s5, 1024, %s297, [#allocation9], 64, 64, 4
        $region32: #{tpu_custom_call.1} parent=11 // pred_fallthru
          _
        // Predicated region
        $region33: #{tpu_custom_call.1} parent=11 // pred_check
          %p303 = pneg %p175
        $region34: #{tpu_custom_call.1} parent=11 // pred_check_branch
          %305 = sbr.rel (%p303) target = $region36
        $region35: #{tpu_custom_call.1} parent=11 // pred_region
          _
        $region36: #{tpu_custom_call.1} parent=11 // pred_fallthru
          _
        // Predicated region
        $region37: #{tpu_custom_call.1} parent=11 // pred_check
          %p306 = pneg %p196
        $region38: #{tpu_custom_call.1} parent=11 // pred_check_branch
          %308 = sbr.rel (%p306) target = $region40
        $region39: #{tpu_custom_call.1} parent=11 // pred_region
          %s310 = ssub.s32 1024, 1024
          %311 = vsyncadd [#allocation9], %s310
          %s312 = sshll.u32 [#allocation10], 4
          %s313 = int_to_ptr.vmem [resolvable:$true] %s312
          %318 = dma.hbm_to_vmem [thread:$0]  %s7, 1024, %s313, [#allocation9], 64, 64, 4
        $region40: #{tpu_custom_call.1} parent=11 // pred_fallthru
          _
        // Predicated region
        $region41: #{tpu_custom_call.1} parent=11 // pred_check
          %p319 = pneg %p217
        $region42: #{tpu_custom_call.1} parent=11 // pred_check_branch
          %321 = sbr.rel (%p319) target = $region44
        $region43: #{tpu_custom_call.1} parent=11 // pred_region
          _
        $region44: #{tpu_custom_call.1} parent=11 // pred_fallthru
          _
      $region12: #{tpu_custom_call.1} parent=5 // pred_fallthru
        _
      %p322 = scmp.lt.s32.totalorder %s23, 2
      // Predicated region
      $region45: #{tpu_custom_call.1} parent=5 // pred_check
        %p323 = pneg %p322
      $region46: #{tpu_custom_call.1} parent=5 // pred_check_branch
        %325 = sbr.rel (%p323) target = $region48
      $region47: #{tpu_custom_call.1} parent=5 // pred_region
        // Predicated region
        $region49: #{tpu_custom_call.1} parent=47 // pred_check
          %p326 = pneg %p43
        $region50: #{tpu_custom_call.1} parent=47 // pred_check_branch
          %328 = sbr.rel (%p326) target = $region52
        $region51: #{tpu_custom_call.1} parent=47 // pred_region
          %s329 = sand.u32 %s33, 1
          %s330 = scalar_lea.sflag [#allocation3], %s329
          %s331 = sand.u32 %s33, 1
          %s332 = smul.addr %s331, 64
          %s333 = scalar_lea.vmem [#allocation2], %s332
          %s334 = smul.u32 8, %s23
          %s336 = ssub.s32 1024, 1024
          %337 = vsyncadd %s330, %s336
          %s338 = smul.addr %s334, 2
          %s339 = smul.addr %s338, 64
          %s340 = scalar_lea.hbm %s0, %s339
          %s341 = sshll.u32 %s333, 4
          %s342 = int_to_ptr.vmem [resolvable:$true] %s341
          %347 = dma.hbm_to_vmem [thread:$0]  %s340, 1024, %s342, %s330, 128, 128, 8
        $region52: #{tpu_custom_call.1} parent=47 // pred_fallthru
          _
      $region48: #{tpu_custom_call.1} parent=5 // pred_fallthru
        _
      %p348 = scmp.le.s32.totalorder 1, %s23
      %p349 = scmp.lt.s32.totalorder %s23, 3
      %p350 = pnand %p348, %p349
      %p351 = pneg %p350
      // Predicated region
      $region53: #{tpu_custom_call.1} parent=5 // pred_check
        _
      $region54: #{tpu_custom_call.1} parent=5 // pred_check_branch
        %353 = sbr.rel (%p350) target = $region56
      $region55: #{tpu_custom_call.1} parent=5 // pred_region
        %s354 = ssub.s32 %s23, 1
        %s355 = sand.u32 %s36, 1
        %s356 = scalar_lea.sflag [#allocation3], %s355
        %s357 = sand.u32 %s36, 1
        %s358 = smul.addr %s357, 64
        %s359 = scalar_lea.vmem [#allocation2], %s358
        // Predicated region
        $region57: #{tpu_custom_call.1} parent=55 // pred_check
          %p360 = pneg %p49
        $region58: #{tpu_custom_call.1} parent=55 // pred_check_branch
          %362 = sbr.rel (%p360) target = $region60
        $region59: #{tpu_custom_call.1} parent=55 // pred_region
          %363 = dma.done %s356, 1024
        $region60: #{tpu_custom_call.1} parent=55 // pred_fallthru
          _
        // Predicated region
        $region61: #{tpu_custom_call.1} parent=55 // pred_check
          %p364 = pneg %p70
        $region62: #{tpu_custom_call.1} parent=55 // pred_check_branch
          %366 = sbr.rel (%p364) target = $region64
        $region63: #{tpu_custom_call.1} parent=55 // pred_region
          %367 = dma.done [#allocation6], 4096
        $region64: #{tpu_custom_call.1} parent=55 // pred_fallthru
          _
        // Predicated region
        $region65: #{tpu_custom_call.1} parent=55 // pred_check
          %p368 = pneg %p112
        $region66: #{tpu_custom_call.1} parent=55 // pred_check_branch
          %370 = sbr.rel (%p368) target = $region68
        $region67: #{tpu_custom_call.1} parent=55 // pred_region
          %371 = dma.done [#allocation6], 1024
        $region68: #{tpu_custom_call.1} parent=55 // pred_fallthru
          _
        // Predicated region
        $region69: #{tpu_custom_call.1} parent=55 // pred_check
          %p372 = pneg %p154
        $region70: #{tpu_custom_call.1} parent=55 // pred_check_branch
          %374 = sbr.rel (%p372) target = $region72
        $region71: #{tpu_custom_call.1} parent=55 // pred_region
          %375 = dma.done [#allocation9], 1024
        $region72: #{tpu_custom_call.1} parent=55 // pred_fallthru
          _
        // Predicated region
        $region73: #{tpu_custom_call.1} parent=55 // pred_check
          %p376 = pneg %p196
        $region74: #{tpu_custom_call.1} parent=55 // pred_check_branch
          %378 = sbr.rel (%p376) target = $region76
        $region75: #{tpu_custom_call.1} parent=55 // pred_region
          %379 = dma.done [#allocation9], 1024
        $region76: #{tpu_custom_call.1} parent=55 // pred_fallthru
          _
        %s380 = sand.u32 %s36, 1
        %s381 = scalar_lea.sflag [#allocation3], %s380
        %s382 = sand.u32 %s36, 1
        %s383 = smul.addr %s382, 64
        %s384 = scalar_lea.vmem [#allocation2], %s383
        %p385 = pneg %p49
        %p386 = pneg %p46
        %p387 = pneg %p70
        %p388 = pneg %p67
        %p389 = pneg %p91
        %p390 = pneg %p88
        %p391 = pneg %p112
        %p392 = pneg %p109
        %p393 = pneg %p133
        %p394 = pneg %p130
        %p395 = pneg %p154
        %p396 = pneg %p151
        %p397 = pneg %p175
        %p398 = pneg %p172
        %p399 = pneg %p196
        %p400 = pneg %p193
        %p401 = pneg %p217
        %p402 = pneg %p214
        %p403 = pneg %p243
        %p404 = pneg %p240
        %s405 = sand.u32 %s230, 1
        %s406 = scalar_lea.sflag [#allocation4], %s405
        %s407 = sand.u32 %s230, 1
        %s408 = smul.addr %s407, 64
        %s409 = scalar_lea.vmem [#allocation11], %s408
        %s410 = smul.u32 8, %s28
        %s411 = smul.u32 8, %s28
        %v413 = vld [vmem:[%s359] sm:$0xff]
        %v414 = vld [vmem:[%s359 + $0x8] sm:$0xff]
        %v415 = vld [vmem:[%s359 + $0x10] sm:$0xff]
        %v416 = vld [vmem:[%s359 + $0x18] sm:$0xff]
        %v417 = vld [vmem:[%s359 + $0x20] sm:$0xff]
        %v418 = vld [vmem:[%s359 + $0x28] sm:$0xff]
        %v419 = vld [vmem:[%s359 + $0x30] sm:$0xff]
        %v420 = vld [vmem:[%s359 + $0x38] sm:$0xff]
        %v421 = vld [vmem:[#allocation5] sm:$0xff]
        %v422 = vld [vmem:[#allocation5 + $0x8] sm:$0xff]
        %v423 = vld [vmem:[#allocation5 + $0x10] sm:$0xff]
        %v424 = vld [vmem:[#allocation5 + $0x18] sm:$0xff]
        %v425 = vld [vmem:[#allocation5 + $0x20] sm:$0xff]
        %v426 = vld [vmem:[#allocation5 + $0x28] sm:$0xff]
        %v427 = vld [vmem:[#allocation5 + $0x30] sm:$0xff]
        %v428 = vld [vmem:[#allocation5 + $0x38] sm:$0xff]
        %v429 = vld [vmem:[#allocation5 + $0x40] sm:$0xff]
        %v430 = vld [vmem:[#allocation5 + $0x48] sm:$0xff]
        %v431 = vld [vmem:[#allocation5 + $0x50] sm:$0xff]
        %v432 = vld [vmem:[#allocation5 + $0x58] sm:$0xff]
        %v433 = vld [vmem:[#allocation5 + $0x60] sm:$0xff]
        %v434 = vld [vmem:[#allocation5 + $0x68] sm:$0xff]
        %v435 = vld [vmem:[#allocation5 + $0x70] sm:$0xff]
        %v436 = vld [vmem:[#allocation5 + $0x78] sm:$0xff]
        %v437 = vld [vmem:[#allocation5 + $0x80] sm:$0xff]
        %v438 = vld [vmem:[#allocation5 + $0x88] sm:$0xff]
        %v439 = vld [vmem:[#allocation5 + $0x90] sm:$0xff]
        %v440 = vld [vmem:[#allocation5 + $0x98] sm:$0xff]
        %v441 = vld [vmem:[#allocation5 + $0xa0] sm:$0xff]
        %v442 = vld [vmem:[#allocation5 + $0xa8] sm:$0xff]
        %v443 = vld [vmem:[#allocation5 + $0xb0] sm:$0xff]
        %v444 = vld [vmem:[#allocation5 + $0xb8] sm:$0xff]
        %v445 = vld [vmem:[#allocation5 + $0xc0] sm:$0xff]
        %v446 = vld [vmem:[#allocation5 + $0xc8] sm:$0xff]
        %v447 = vld [vmem:[#allocation5 + $0xd0] sm:$0xff]
        %v448 = vld [vmem:[#allocation5 + $0xd8] sm:$0xff]
        %v449 = vld [vmem:[#allocation5 + $0xe0] sm:$0xff]
        %v450 = vld [vmem:[#allocation5 + $0xe8] sm:$0xff]
        %v451 = vld [vmem:[#allocation5 + $0xf0] sm:$0xff]
        %v452 = vld [vmem:[#allocation5 + $0xf8] sm:$0xff]
        %v461 = vunpack.c.l.b16 %v413
        %v462 = vunpack.c.h.b16 %v413
        %v463 = vunpack.c.l.b16 %v414
        %v464 = vunpack.c.h.b16 %v414
        %v465 = vunpack.c.l.b16 %v415
        %v466 = vunpack.c.h.b16 %v415
        %v467 = vunpack.c.l.b16 %v416
        %v468 = vunpack.c.h.b16 %v416
        %v469 = vunpack.c.l.b16 %v417
        %v470 = vunpack.c.h.b16 %v417
        %v471 = vunpack.c.l.b16 %v418
        %v472 = vunpack.c.h.b16 %v418
        %v473 = vunpack.c.l.b16 %v419
        %v474 = vunpack.c.h.b16 %v419
        %v475 = vunpack.c.l.b16 %v420
        %v476 = vunpack.c.h.b16 %v420
        %v477 = vpack.c.b16 %v463, %v461
        %v478 = vpack.c.b16 %v464, %v462
        %v479 = vpack.c.b16 %v467, %v465
        %v480 = vpack.c.b16 %v468, %v466
        %v481 = vpack.c.b16 %v471, %v469
        %v482 = vpack.c.b16 %v472, %v470
        %v483 = vpack.c.b16 %v475, %v473
        %v484 = vpack.c.b16 %v476, %v474
        %v525 = vunpack.c.l.b16 %v421
        %v526 = vunpack.c.h.b16 %v421
        %v527 = vunpack.c.l.b16 %v422
        %v528 = vunpack.c.h.b16 %v422
        %v529 = vunpack.c.l.b16 %v423
        %v530 = vunpack.c.h.b16 %v423
        %v531 = vunpack.c.l.b16 %v424
        %v532 = vunpack.c.h.b16 %v424
        %v533 = vunpack.c.l.b16 %v425
        %v534 = vunpack.c.h.b16 %v425
        %v535 = vunpack.c.l.b16 %v426
        %v536 = vunpack.c.h.b16 %v426
        %v537 = vunpack.c.l.b16 %v427
        %v538 = vunpack.c.h.b16 %v427
        %v539 = vunpack.c.l.b16 %v428
        %v540 = vunpack.c.h.b16 %v428
        %v541 = vunpack.c.l.b16 %v429
        %v542 = vunpack.c.h.b16 %v429
        %v543 = vunpack.c.l.b16 %v430
        %v544 = vunpack.c.h.b16 %v430
        %v545 = vunpack.c.l.b16 %v431
        %v546 = vunpack.c.h.b16 %v431
        %v547 = vunpack.c.l.b16 %v432
        %v548 = vunpack.c.h.b16 %v432
        %v549 = vunpack.c.l.b16 %v433
        %v550 = vunpack.c.h.b16 %v433
        %v551 = vunpack.c.l.b16 %v434
        %v552 = vunpack.c.h.b16 %v434
        %v553 = vunpack.c.l.b16 %v435
        %v554 = vunpack.c.h.b16 %v435
        %v555 = vunpack.c.l.b16 %v436
        %v556 = vunpack.c.h.b16 %v436
        %v557 = vunpack.c.l.b16 %v437
        %v558 = vunpack.c.h.b16 %v437
        %v559 = vunpack.c.l.b16 %v438
        %v560 = vunpack.c.h.b16 %v438
        %v561 = vunpack.c.l.b16 %v439
        %v562 = vunpack.c.h.b16 %v439
        %v563 = vunpack.c.l.b16 %v440
        %v564 = vunpack.c.h.b16 %v440
        %v565 = vunpack.c.l.b16 %v441
        %v566 = vunpack.c.h.b16 %v441
        %v567 = vunpack.c.l.b16 %v442
        %v568 = vunpack.c.h.b16 %v442
        %v569 = vunpack.c.l.b16 %v443
        %v570 = vunpack.c.h.b16 %v443
        %v571 = vunpack.c.l.b16 %v444
        %v572 = vunpack.c.h.b16 %v444
        %v573 = vunpack.c.l.b16 %v445
        %v574 = vunpack.c.h.b16 %v445
        %v575 = vunpack.c.l.b16 %v446
        %v576 = vunpack.c.h.b16 %v446
        %v577 = vunpack.c.l.b16 %v447
        %v578 = vunpack.c.h.b16 %v447
        %v579 = vunpack.c.l.b16 %v448
        %v580 = vunpack.c.h.b16 %v448
        %v581 = vunpack.c.l.b16 %v449
        %v582 = vunpack.c.h.b16 %v449
        %v583 = vunpack.c.l.b16 %v450
        %v584 = vunpack.c.h.b16 %v450
        %v585 = vunpack.c.l.b16 %v451
        %v586 = vunpack.c.h.b16 %v451
        %v587 = vunpack.c.l.b16 %v452
        %v588 = vunpack.c.h.b16 %v452
        %v589 = vpack.c.b16 %v527, %v525
        %v590 = vpack.c.b16 %v528, %v526
        %v591 = vpack.c.b16 %v531, %v529
        %v592 = vpack.c.b16 %v532, %v530
        %v593 = vpack.c.b16 %v535, %v533
        %v594 = vpack.c.b16 %v536, %v534
        %v595 = vpack.c.b16 %v539, %v537
        %v596 = vpack.c.b16 %v540, %v538
        %v597 = vpack.c.b16 %v543, %v541
        %v598 = vpack.c.b16 %v544, %v542
        %v599 = vpack.c.b16 %v547, %v545
        %v600 = vpack.c.b16 %v548, %v546
        %v601 = vpack.c.b16 %v551, %v549
        %v602 = vpack.c.b16 %v552, %v550
        %v603 = vpack.c.b16 %v555, %v553
        %v604 = vpack.c.b16 %v556, %v554
        %v605 = vpack.c.b16 %v559, %v557
        %v606 = vpack.c.b16 %v560, %v558
        %v607 = vpack.c.b16 %v563, %v561
        %v608 = vpack.c.b16 %v564, %v562
        %v609 = vpack.c.b16 %v567, %v565
        %v610 = vpack.c.b16 %v568, %v566
        %v611 = vpack.c.b16 %v571, %v569
        %v612 = vpack.c.b16 %v572, %v570
        %v613 = vpack.c.b16 %v575, %v573
        %v614 = vpack.c.b16 %v576, %v574
        %v615 = vpack.c.b16 %v579, %v577
        %v616 = vpack.c.b16 %v580, %v578
        %v617 = vpack.c.b16 %v583, %v581
        %v618 = vpack.c.b16 %v584, %v582
        %v619 = vpack.c.b16 %v587, %v585
        %v620 = vpack.c.b16 %v588, %v586
        %653 = vmatprep.subr.bf16.mxu0 %v604
        %654 = vmatpush1.bf16.msra.mxu0 %v603
        %655 = vmatprep.subr.bf16.mxu0 %v602
        %656 = vmatpush1.bf16.msra.mxu0 %v601
        %657 = vmatprep.subr.bf16.mxu0 %v600
        %658 = vmatpush1.bf16.msra.mxu0 %v599
        %659 = vmatprep.subr.bf16.mxu0 %v598
        %660 = vmatpush1.bf16.msra.mxu0 %v597
        %661 = vmatprep.subr.bf16.mxu0 %v596
        %662 = vmatpush1.bf16.msra.mxu0 %v595
        %663 = vmatprep.subr.bf16.mxu0 %v594
        %664 = vmatpush1.bf16.msra.mxu0 %v593
        %665 = vmatprep.subr.bf16.mxu0 %v592
        %666 = vmatpush1.bf16.msra.mxu0 %v591
        %667 = vmatprep.subr.bf16.mxu0 %v590
        %668 = vmatpush1.bf16.msra.mxu0 %v589
        %669 = vmatprep.subr.bf16.mxu0 %v620
        %670 = vmatpush2.bf16.msra.mxu0 %v619
        %671 = vmatprep.subr.bf16.mxu0 %v618
        %672 = vmatpush2.bf16.msra.mxu0 %v617
        %673 = vmatprep.subr.bf16.mxu0 %v616
        %674 = vmatpush2.bf16.msra.mxu0 %v615
        %675 = vmatprep.subr.bf16.mxu0 %v614
        %676 = vmatpush2.bf16.msra.mxu0 %v613
        %677 = vmatprep.subr.bf16.mxu0 %v612
        %678 = vmatpush2.bf16.msra.mxu0 %v611
        %679 = vmatprep.subr.bf16.mxu0 %v610
        %680 = vmatpush2.bf16.msra.mxu0 %v609
        %681 = vmatprep.subr.bf16.mxu0 %v608
        %682 = vmatpush2.bf16.msra.mxu0 %v607
        %683 = vmatprep.subr.bf16.mxu0 %v606
        %684 = vmatpush2.bf16.msra.mxu0 %v605
        %685 = vmatprep.mubr.bf16.mxu0 %v478
        %686 = vmatmul.mubr.bf16.gmra.mxu0 %v477
        %v687 = vpop.f32.mrf.mxu0
        %v688 = vadd.f32 0.0, %v687
        %v689 = vpop.f32.mrf.mxu0
        %v690 = vadd.f32 0.0, %v689
        %v691 = vpop.f32.mrf.mxu0
        %v692 = vadd.f32 0.0, %v691
        %v693 = vpop.f32.mrf.mxu0
        %v694 = vadd.f32 0.0, %v693
        %695 = vmatprep.mubr.bf16.mxu0 %v480
        %696 = vmatmul.mubr.bf16.gmra.mxu0 %v479
        %v697 = vpop.f32.mrf.mxu0
        %v698 = vadd.f32 0.0, %v697
        %v699 = vpop.f32.mrf.mxu0
        %v700 = vadd.f32 0.0, %v699
        %v701 = vpop.f32.mrf.mxu0
        %v702 = vadd.f32 0.0, %v701
        %v703 = vpop.f32.mrf.mxu0
        %v704 = vadd.f32 0.0, %v703
        %705 = vmatprep.mubr.bf16.mxu0 %v482
        %706 = vmatmul.mubr.bf16.gmra.mxu0 %v481
        %v707 = vpop.f32.mrf.mxu0
        %v708 = vadd.f32 0.0, %v707
        %v709 = vpop.f32.mrf.mxu0
        %v710 = vadd.f32 0.0, %v709
        %v711 = vpop.f32.mrf.mxu0
        %v712 = vadd.f32 0.0, %v711
        %v713 = vpop.f32.mrf.mxu0
        %v714 = vadd.f32 0.0, %v713
        %715 = vmatprep.mubr.bf16.mxu0 %v484
        %716 = vmatmul.mubr.bf16.gmra.mxu0 %v483
        %v717 = vpop.f32.mrf.mxu0
        %v718 = vadd.f32 0.0, %v717
        %v719 = vpop.f32.mrf.mxu0
        %v720 = vadd.f32 0.0, %v719
        %v721 = vpop.f32.mrf.mxu0
        %v722 = vadd.f32 0.0, %v721
        %v723 = vpop.f32.mrf.mxu0
        %v724 = vadd.f32 0.0, %v723
        %725 = vdwg.mxu0
        %v726 = vld [vmem:[%s2] sm:$0x1]
        %v728 = vlaneseq
        %v729 = vshrl.u32 %v728, 7
        %v730 = vsub.s32 0, %v729
        %v731 = vrot.slane %v726, %v730
        %v733 = vadd.f32 %v688, %v731
        %v734 = vadd.f32 %v692, %v731
        %v735 = vadd.f32 %v698, %v731
        %v736 = vadd.f32 %v702, %v731
        %v737 = vadd.f32 %v708, %v731
        %v738 = vadd.f32 %v712, %v731
        %v739 = vadd.f32 %v718, %v731
        %v740 = vadd.f32 %v722, %v731
        %v741 = vmax.f32 %v733, 0.0
        %v742 = vmax.f32 %v734, 0.0
        %v743 = vmax.f32 %v735, 0.0
        %v744 = vmax.f32 %v736, 0.0
        %v745 = vmax.f32 %v737, 0.0
        %v746 = vmax.f32 %v738, 0.0
        %v747 = vmax.f32 %v739, 0.0
        %v748 = vmax.f32 %v740, 0.0
        %v749 = vpack.c.bf16 %v742, %v741
        %v750 = vpack.c.bf16 %v744, %v743
        %v751 = vpack.c.bf16 %v746, %v745
        %v752 = vpack.c.bf16 %v748, %v747
        %v753 = vld [vmem:[%s4] sm:$0x1]
        %v755 = vlaneseq
        %v756 = vshrl.u32 %v755, 7
        %v757 = vsub.s32 0, %v756
        %v758 = vrot.slane %v753, %v757
        %v760 = vld [vmem:[%s6] sm:$0x1]
        %v762 = vlaneseq
        %v763 = vshrl.u32 %v762, 7
        %v764 = vsub.s32 0, %v763
        %v765 = vrot.slane %v760, %v764
        %v767 = vld [vmem:[#allocation7] sm:$0xf]
        %v768 = vld [vmem:[#allocation7 + $0x4] sm:$0xf]
        %v769 = vld [vmem:[#allocation7 + $0x8] sm:$0xf]
        %v770 = vld [vmem:[#allocation7 + $0xc] sm:$0xf]
        %v771 = vld [vmem:[#allocation7 + $0x10] sm:$0xf]
        %v772 = vld [vmem:[#allocation7 + $0x14] sm:$0xf]
        %v773 = vld [vmem:[#allocation7 + $0x18] sm:$0xf]
        %v774 = vld [vmem:[#allocation7 + $0x1c] sm:$0xf]
        %v775 = vld [vmem:[#allocation7 + $0x20] sm:$0xf]
        %v776 = vld [vmem:[#allocation7 + $0x24] sm:$0xf]
        %v777 = vld [vmem:[#allocation7 + $0x28] sm:$0xf]
        %v778 = vld [vmem:[#allocation7 + $0x2c] sm:$0xf]
        %v779 = vld [vmem:[#allocation7 + $0x30] sm:$0xf]
        %v780 = vld [vmem:[#allocation7 + $0x34] sm:$0xf]
        %v781 = vld [vmem:[#allocation7 + $0x38] sm:$0xf]
        %v782 = vld [vmem:[#allocation7 + $0x3c] sm:$0xf]
        %v799 = vunpack.c.l.b16 %v767
        %v800 = vunpack.c.l.b16 %v768
        %v801 = vunpack.c.l.b16 %v769
        %v802 = vunpack.c.l.b16 %v770
        %v803 = vunpack.c.l.b16 %v771
        %v804 = vunpack.c.l.b16 %v772
        %v805 = vunpack.c.l.b16 %v773
        %v806 = vunpack.c.l.b16 %v774
        %v807 = vunpack.c.l.b16 %v775
        %v808 = vunpack.c.l.b16 %v776
        %v809 = vunpack.c.l.b16 %v777
        %v810 = vunpack.c.l.b16 %v778
        %v811 = vunpack.c.l.b16 %v779
        %v812 = vunpack.c.l.b16 %v780
        %v813 = vunpack.c.l.b16 %v781
        %v814 = vunpack.c.l.b16 %v782
        %v815 = vpack.c.b16 %v800, %v799
        %v816 = vpack.c.b16 %v802, %v801
        %v817 = vpack.c.b16 %v804, %v803
        %v818 = vpack.c.b16 %v806, %v805
        %v819 = vpack.c.b16 %v808, %v807
        %v820 = vpack.c.b16 %v810, %v809
        %v821 = vpack.c.b16 %v812, %v811
        %v822 = vpack.c.b16 %v814, %v813
        %831 = vmatprep.subr.bf16.mxu0 0
        %832 = vmatpush1.bf16.msra.mxu0 %v822
        %833 = vmatprep.subr.bf16.mxu0 0
        %834 = vmatpush1.bf16.msra.mxu0 %v821
        %835 = vmatprep.subr.bf16.mxu0 0
        %836 = vmatpush1.bf16.msra.mxu0 %v820
        %837 = vmatprep.subr.bf16.mxu0 0
        %838 = vmatpush1.bf16.msra.mxu0 %v819
        %839 = vmatprep.subr.bf16.mxu0 0
        %840 = vmatpush1.bf16.msra.mxu0 %v818
        %841 = vmatprep.subr.bf16.mxu0 0
        %842 = vmatpush1.bf16.msra.mxu0 %v817
        %843 = vmatprep.subr.bf16.mxu0 0
        %844 = vmatpush1.bf16.msra.mxu0 %v816
        %845 = vmatprep.subr.bf16.mxu0 0
        %846 = vmatpush1.bf16.msra.mxu0 %v815
        %847 = vmatprep.subr.bf16.mxu0 0
        %848 = vmatpush2.bf16.msra.mxu0 0
        %849 = vmatprep.subr.bf16.mxu0 0
        %850 = vmatpush2.bf16.msra.mxu0 0
        %851 = vmatprep.subr.bf16.mxu0 0
        %852 = vmatpush2.bf16.msra.mxu0 0
        %853 = vmatprep.subr.bf16.mxu0 0
        %854 = vmatpush2.bf16.msra.mxu0 0
        %855 = vmatprep.subr.bf16.mxu0 0
        %856 = vmatpush2.bf16.msra.mxu0 0
        %857 = vmatprep.subr.bf16.mxu0 0
        %858 = vmatpush2.bf16.msra.mxu0 0
        %859 = vmatprep.subr.bf16.mxu0 0
        %860 = vmatpush2.bf16.msra.mxu0 0
        %861 = vmatprep.subr.bf16.mxu0 0
        %862 = vmatpush2.bf16.msra.mxu0 0
        %863 = vmatprep.mubr.bf16.mxu0 0
        %864 = vmatmul.mubr.bf16.gmra.mxu0 %v749
        %v865 = vpop.f32.mrf.mxu0
        %v866 = vadd.f32 %v758, %v865
        %v867 = vpop.f32.mrf.mxu0
        %v868 = vpop.f32.mrf.mxu0
        %v869 = vadd.f32 %v758, %v868
        %v870 = vpop.f32.mrf.mxu0
        %871 = vmatprep.mubr.bf16.mxu0 0
        %872 = vmatmul.mubr.bf16.gmra.mxu0 %v750
        %v873 = vpop.f32.mrf.mxu0
        %v874 = vadd.f32 %v758, %v873
        %v875 = vpop.f32.mrf.mxu0
        %v876 = vpop.f32.mrf.mxu0
        %v877 = vadd.f32 %v758, %v876
        %v878 = vpop.f32.mrf.mxu0
        %879 = vmatprep.mubr.bf16.mxu0 0
        %880 = vmatmul.mubr.bf16.gmra.mxu0 %v751
        %v881 = vpop.f32.mrf.mxu0
        %v882 = vadd.f32 %v758, %v881
        %v883 = vpop.f32.mrf.mxu0
        %v884 = vpop.f32.mrf.mxu0
        %v885 = vadd.f32 %v758, %v884
        %v886 = vpop.f32.mrf.mxu0
        %887 = vmatprep.mubr.bf16.mxu0 0
        %888 = vmatmul.mubr.bf16.gmra.mxu0 %v752
        %v889 = vpop.f32.mrf.mxu0
        %v890 = vadd.f32 %v758, %v889
        %v891 = vpop.f32.mrf.mxu0
        %v892 = vpop.f32.mrf.mxu0
        %v893 = vadd.f32 %v758, %v892
        %v894 = vpop.f32.mrf.mxu0
        %895 = vdwg.mxu0
        %v896 = vmax.f32 %v866, 0.0
        %v897 = vmax.f32 %v869, 0.0
        %v898 = vmax.f32 %v874, 0.0
        %v899 = vmax.f32 %v877, 0.0
        %v900 = vmax.f32 %v882, 0.0
        %v901 = vmax.f32 %v885, 0.0
        %v902 = vmax.f32 %v890, 0.0
        %v903 = vmax.f32 %v893, 0.0
        %v904 = vpack.c.bf16 %v897, %v896
        %v905 = vpack.c.bf16 %v899, %v898
        %v906 = vpack.c.bf16 %v901, %v900
        %v907 = vpack.c.bf16 %v903, %v902
        %908 = vmatprep.subr.bf16.mxu0 0
        %909 = vmatpush1.bf16.msra.mxu0 %v822
        %910 = vmatprep.subr.bf16.mxu0 0
        %911 = vmatpush1.bf16.msra.mxu0 %v821
        %912 = vmatprep.subr.bf16.mxu0 0
        %913 = vmatpush1.bf16.msra.mxu0 %v820
        %914 = vmatprep.subr.bf16.mxu0 0
        %915 = vmatpush1.bf16.msra.mxu0 %v819
        %916 = vmatprep.subr.bf16.mxu0 0
        %917 = vmatpush1.bf16.msra.mxu0 %v818
        %918 = vmatprep.subr.bf16.mxu0 0
        %919 = vmatpush1.bf16.msra.mxu0 %v817
        %920 = vmatprep.subr.bf16.mxu0 0
        %921 = vmatpush1.bf16.msra.mxu0 %v816
        %922 = vmatprep.subr.bf16.mxu0 0
        %923 = vmatpush1.bf16.msra.mxu0 %v815
        %924 = vmatprep.subr.bf16.mxu0 0
        %925 = vmatpush2.bf16.msra.mxu0 0
        %926 = vmatprep.subr.bf16.mxu0 0
        %927 = vmatpush2.bf16.msra.mxu0 0
        %928 = vmatprep.subr.bf16.mxu0 0
        %929 = vmatpush2.bf16.msra.mxu0 0
        %930 = vmatprep.subr.bf16.mxu0 0
        %931 = vmatpush2.bf16.msra.mxu0 0
        %932 = vmatprep.subr.bf16.mxu0 0
        %933 = vmatpush2.bf16.msra.mxu0 0
        %934 = vmatprep.subr.bf16.mxu0 0
        %935 = vmatpush2.bf16.msra.mxu0 0
        %936 = vmatprep.subr.bf16.mxu0 0
        %937 = vmatpush2.bf16.msra.mxu0 0
        %938 = vmatprep.subr.bf16.mxu0 0
        %939 = vmatpush2.bf16.msra.mxu0 0
        %940 = vmatprep.mubr.bf16.mxu0 0
        %941 = vmatmul.mubr.bf16.gmra.mxu0 %v904
        %v942 = vpop.f32.mrf.mxu0
        %v943 = vadd.f32 %v758, %v942
        %v944 = vpop.f32.mrf.mxu0
        %v945 = vpop.f32.mrf.mxu0
        %v946 = vadd.f32 %v758, %v945
        %v947 = vpop.f32.mrf.mxu0
        %948 = vmatprep.mubr.bf16.mxu0 0
        %949 = vmatmul.mubr.bf16.gmra.mxu0 %v905
        %v950 = vpop.f32.mrf.mxu0
        %v951 = vadd.f32 %v758, %v950
        %v952 = vpop.f32.mrf.mxu0
        %v953 = vpop.f32.mrf.mxu0
        %v954 = vadd.f32 %v758, %v953
        %v955 = vpop.f32.mrf.mxu0
        %956 = vmatprep.mubr.bf16.mxu0 0
        %957 = vmatmul.mubr.bf16.gmra.mxu0 %v906
        %v958 = vpop.f32.mrf.mxu0
        %v959 = vadd.f32 %v758, %v958
        %v960 = vpop.f32.mrf.mxu0
        %v961 = vpop.f32.mrf.mxu0
        %v962 = vadd.f32 %v758, %v961
        %v963 = vpop.f32.mrf.mxu0
        %964 = vmatprep.mubr.bf16.mxu0 0
        %965 = vmatmul.mubr.bf16.gmra.mxu0 %v907
        %v966 = vpop.f32.mrf.mxu0
        %v967 = vadd.f32 %v758, %v966
        %v968 = vpop.f32.mrf.mxu0
        %v969 = vpop.f32.mrf.mxu0
        %v970 = vadd.f32 %v758, %v969
        %v971 = vpop.f32.mrf.mxu0
        %972 = vdwg.mxu0
        %v973 = vmax.f32 %v943, 0.0
        %v974 = vmax.f32 %v946, 0.0
        %v975 = vmax.f32 %v951, 0.0
        %v976 = vmax.f32 %v954, 0.0
        %v977 = vmax.f32 %v959, 0.0
        %v978 = vmax.f32 %v962, 0.0
        %v979 = vmax.f32 %v967, 0.0
        %v980 = vmax.f32 %v970, 0.0
        %v981 = vpack.c.bf16 %v974, %v973
        %v982 = vpack.c.bf16 %v976, %v975
        %v983 = vpack.c.bf16 %v978, %v977
        %v984 = vpack.c.bf16 %v980, %v979
        %985 = vmatprep.subr.bf16.mxu0 0
        %986 = vmatpush1.bf16.msra.mxu0 %v822
        %987 = vmatprep.subr.bf16.mxu0 0
        %988 = vmatpush1.bf16.msra.mxu0 %v821
        %989 = vmatprep.subr.bf16.mxu0 0
        %990 = vmatpush1.bf16.msra.mxu0 %v820
        %991 = vmatprep.subr.bf16.mxu0 0
        %992 = vmatpush1.bf16.msra.mxu0 %v819
        %993 = vmatprep.subr.bf16.mxu0 0
        %994 = vmatpush1.bf16.msra.mxu0 %v818
        %995 = vmatprep.subr.bf16.mxu0 0
        %996 = vmatpush1.bf16.msra.mxu0 %v817
        %997 = vmatprep.subr.bf16.mxu0 0
        %998 = vmatpush1.bf16.msra.mxu0 %v816
        %999 = vmatprep.subr.bf16.mxu0 0
        %1000 = vmatpush1.bf16.msra.mxu0 %v815
        %1001 = vmatprep.subr.bf16.mxu0 0
        %1002 = vmatpush2.bf16.msra.mxu0 0
        %1003 = vmatprep.subr.bf16.mxu0 0
        %1004 = vmatpush2.bf16.msra.mxu0 0
        %1005 = vmatprep.subr.bf16.mxu0 0
        %1006 = vmatpush2.bf16.msra.mxu0 0
        %1007 = vmatprep.subr.bf16.mxu0 0
        %1008 = vmatpush2.bf16.msra.mxu0 0
        %1009 = vmatprep.subr.bf16.mxu0 0
        %1010 = vmatpush2.bf16.msra.mxu0 0
        %1011 = vmatprep.subr.bf16.mxu0 0
        %1012 = vmatpush2.bf16.msra.mxu0 0
        %1013 = vmatprep.subr.bf16.mxu0 0
        %1014 = vmatpush2.bf16.msra.mxu0 0
        %1015 = vmatprep.subr.bf16.mxu0 0
        %1016 = vmatpush2.bf16.msra.mxu0 0
        %1017 = vmatprep.mubr.bf16.mxu0 0
        %1018 = vmatmul.mubr.bf16.gmra.mxu0 %v981
        %v1019 = vpop.f32.mrf.mxu0
        %v1020 = vadd.f32 %v758, %v1019
        %v1021 = vpop.f32.mrf.mxu0
        %v1022 = vpop.f32.mrf.mxu0
        %v1023 = vadd.f32 %v758, %v1022
        %v1024 = vpop.f32.mrf.mxu0
        %1025 = vmatprep.mubr.bf16.mxu0 0
        %1026 = vmatmul.mubr.bf16.gmra.mxu0 %v982
        %v1027 = vpop.f32.mrf.mxu0
        %v1028 = vadd.f32 %v758, %v1027
        %v1029 = vpop.f32.mrf.mxu0
        %v1030 = vpop.f32.mrf.mxu0
        %v1031 = vadd.f32 %v758, %v1030
        %v1032 = vpop.f32.mrf.mxu0
        %1033 = vmatprep.mubr.bf16.mxu0 0
        %1034 = vmatmul.mubr.bf16.gmra.mxu0 %v983
        %v1035 = vpop.f32.mrf.mxu0
        %v1036 = vadd.f32 %v758, %v1035
        %v1037 = vpop.f32.mrf.mxu0
        %v1038 = vpop.f32.mrf.mxu0
        %v1039 = vadd.f32 %v758, %v1038
        %v1040 = vpop.f32.mrf.mxu0
        %1041 = vmatprep.mubr.bf16.mxu0 0
        %1042 = vmatmul.mubr.bf16.gmra.mxu0 %v984
        %v1043 = vpop.f32.mrf.mxu0
        %v1044 = vadd.f32 %v758, %v1043
        %v1045 = vpop.f32.mrf.mxu0
        %v1046 = vpop.f32.mrf.mxu0
        %v1047 = vadd.f32 %v758, %v1046
        %v1048 = vpop.f32.mrf.mxu0
        %1049 = vdwg.mxu0
        %v1050 = vmax.f32 %v1020, 0.0
        %v1051 = vmax.f32 %v1023, 0.0
        %v1052 = vmax.f32 %v1028, 0.0
        %v1053 = vmax.f32 %v1031, 0.0
        %v1054 = vmax.f32 %v1036, 0.0
        %v1055 = vmax.f32 %v1039, 0.0
        %v1056 = vmax.f32 %v1044, 0.0
        %v1057 = vmax.f32 %v1047, 0.0
        %v1058 = vpack.c.bf16 %v1051, %v1050
        %v1059 = vpack.c.bf16 %v1053, %v1052
        %v1060 = vpack.c.bf16 %v1055, %v1054
        %v1061 = vpack.c.bf16 %v1057, %v1056
        %1062 = vmatprep.subr.bf16.mxu0 0
        %1063 = vmatpush1.bf16.msra.mxu0 %v822
        %1064 = vmatprep.subr.bf16.mxu0 0
        %1065 = vmatpush1.bf16.msra.mxu0 %v821
        %1066 = vmatprep.subr.bf16.mxu0 0
        %1067 = vmatpush1.bf16.msra.mxu0 %v820
        %1068 = vmatprep.subr.bf16.mxu0 0
        %1069 = vmatpush1.bf16.msra.mxu0 %v819
        %1070 = vmatprep.subr.bf16.mxu0 0
        %1071 = vmatpush1.bf16.msra.mxu0 %v818
        %1072 = vmatprep.subr.bf16.mxu0 0
        %1073 = vmatpush1.bf16.msra.mxu0 %v817
        %1074 = vmatprep.subr.bf16.mxu0 0
        %1075 = vmatpush1.bf16.msra.mxu0 %v816
        %1076 = vmatprep.subr.bf16.mxu0 0
        %1077 = vmatpush1.bf16.msra.mxu0 %v815
        %1078 = vmatprep.subr.bf16.mxu0 0
        %1079 = vmatpush2.bf16.msra.mxu0 0
        %1080 = vmatprep.subr.bf16.mxu0 0
        %1081 = vmatpush2.bf16.msra.mxu0 0
        %1082 = vmatprep.subr.bf16.mxu0 0
        %1083 = vmatpush2.bf16.msra.mxu0 0
        %1084 = vmatprep.subr.bf16.mxu0 0
        %1085 = vmatpush2.bf16.msra.mxu0 0
        %1086 = vmatprep.subr.bf16.mxu0 0
        %1087 = vmatpush2.bf16.msra.mxu0 0
        %1088 = vmatprep.subr.bf16.mxu0 0
        %1089 = vmatpush2.bf16.msra.mxu0 0
        %1090 = vmatprep.subr.bf16.mxu0 0
        %1091 = vmatpush2.bf16.msra.mxu0 0
        %1092 = vmatprep.subr.bf16.mxu0 0
        %1093 = vmatpush2.bf16.msra.mxu0 0
        %1094 = vmatprep.mubr.bf16.mxu0 0
        %1095 = vmatmul.mubr.bf16.gmra.mxu0 %v1058
        %v1096 = vpop.f32.mrf.mxu0
        %v1097 = vadd.f32 %v758, %v1096
        %v1098 = vpop.f32.mrf.mxu0
        %v1099 = vpop.f32.mrf.mxu0
        %v1100 = vadd.f32 %v758, %v1099
        %v1101 = vpop.f32.mrf.mxu0
        %1102 = vmatprep.mubr.bf16.mxu0 0
        %1103 = vmatmul.mubr.bf16.gmra.mxu0 %v1059
        %v1104 = vpop.f32.mrf.mxu0
        %v1105 = vadd.f32 %v758, %v1104
        %v1106 = vpop.f32.mrf.mxu0
        %v1107 = vpop.f32.mrf.mxu0
        %v1108 = vadd.f32 %v758, %v1107
        %v1109 = vpop.f32.mrf.mxu0
        %1110 = vmatprep.mubr.bf16.mxu0 0
        %1111 = vmatmul.mubr.bf16.gmra.mxu0 %v1060
        %v1112 = vpop.f32.mrf.mxu0
        %v1113 = vadd.f32 %v758, %v1112
        %v1114 = vpop.f32.mrf.mxu0
        %v1115 = vpop.f32.mrf.mxu0
        %v1116 = vadd.f32 %v758, %v1115
        %v1117 = vpop.f32.mrf.mxu0
        %1118 = vmatprep.mubr.bf16.mxu0 0
        %1119 = vmatmul.mubr.bf16.gmra.mxu0 %v1061
        %v1120 = vpop.f32.mrf.mxu0
        %v1121 = vadd.f32 %v758, %v1120
        %v1122 = vpop.f32.mrf.mxu0
        %v1123 = vpop.f32.mrf.mxu0
        %v1124 = vadd.f32 %v758, %v1123
        %v1125 = vpop.f32.mrf.mxu0
        %1126 = vdwg.mxu0
        %v1127 = vmax.f32 %v1097, 0.0
        %v1128 = vmax.f32 %v1100, 0.0
        %v1129 = vmax.f32 %v1105, 0.0
        %v1130 = vmax.f32 %v1108, 0.0
        %v1131 = vmax.f32 %v1113, 0.0
        %v1132 = vmax.f32 %v1116, 0.0
        %v1133 = vmax.f32 %v1121, 0.0
        %v1134 = vmax.f32 %v1124, 0.0
        %v1135 = vpack.c.bf16 %v1128, %v1127
        %v1136 = vpack.c.bf16 %v1130, %v1129
        %v1137 = vpack.c.bf16 %v1132, %v1131
        %v1138 = vpack.c.bf16 %v1134, %v1133
        %1139 = vmatprep.subr.bf16.mxu0 0
        %1140 = vmatpush1.bf16.msra.mxu0 %v822
        %1141 = vmatprep.subr.bf16.mxu0 0
        %1142 = vmatpush1.bf16.msra.mxu0 %v821
        %1143 = vmatprep.subr.bf16.mxu0 0
        %1144 = vmatpush1.bf16.msra.mxu0 %v820
        %1145 = vmatprep.subr.bf16.mxu0 0
        %1146 = vmatpush1.bf16.msra.mxu0 %v819
        %1147 = vmatprep.subr.bf16.mxu0 0
        %1148 = vmatpush1.bf16.msra.mxu0 %v818
        %1149 = vmatprep.subr.bf16.mxu0 0
        %1150 = vmatpush1.bf16.msra.mxu0 %v817
        %1151 = vmatprep.subr.bf16.mxu0 0
        %1152 = vmatpush1.bf16.msra.mxu0 %v816
        %1153 = vmatprep.subr.bf16.mxu0 0
        %1154 = vmatpush1.bf16.msra.mxu0 %v815
        %1155 = vmatprep.subr.bf16.mxu0 0
        %1156 = vmatpush2.bf16.msra.mxu0 0
        %1157 = vmatprep.subr.bf16.mxu0 0
        %1158 = vmatpush2.bf16.msra.mxu0 0
        %1159 = vmatprep.subr.bf16.mxu0 0
        %1160 = vmatpush2.bf16.msra.mxu0 0
        %1161 = vmatprep.subr.bf16.mxu0 0
        %1162 = vmatpush2.bf16.msra.mxu0 0
        %1163 = vmatprep.subr.bf16.mxu0 0
        %1164 = vmatpush2.bf16.msra.mxu0 0
        %1165 = vmatprep.subr.bf16.mxu0 0
        %1166 = vmatpush2.bf16.msra.mxu0 0
        %1167 = vmatprep.subr.bf16.mxu0 0
        %1168 = vmatpush2.bf16.msra.mxu0 0
        %1169 = vmatprep.subr.bf16.mxu0 0
        %1170 = vmatpush2.bf16.msra.mxu0 0
        %1171 = vmatprep.mubr.bf16.mxu0 0
        %1172 = vmatmul.mubr.bf16.gmra.mxu0 %v1135
        %v1173 = vpop.f32.mrf.mxu0
        %v1174 = vadd.f32 %v758, %v1173
        %v1175 = vpop.f32.mrf.mxu0
        %v1176 = vpop.f32.mrf.mxu0
        %v1177 = vadd.f32 %v758, %v1176
        %v1178 = vpop.f32.mrf.mxu0
        %1179 = vmatprep.mubr.bf16.mxu0 0
        %1180 = vmatmul.mubr.bf16.gmra.mxu0 %v1136
        %v1181 = vpop.f32.mrf.mxu0
        %v1182 = vadd.f32 %v758, %v1181
        %v1183 = vpop.f32.mrf.mxu0
        %v1184 = vpop.f32.mrf.mxu0
        %v1185 = vadd.f32 %v758, %v1184
        %v1186 = vpop.f32.mrf.mxu0
        %1187 = vmatprep.mubr.bf16.mxu0 0
        %1188 = vmatmul.mubr.bf16.gmra.mxu0 %v1137
        %v1189 = vpop.f32.mrf.mxu0
        %v1190 = vadd.f32 %v758, %v1189
        %v1191 = vpop.f32.mrf.mxu0
        %v1192 = vpop.f32.mrf.mxu0
        %v1193 = vadd.f32 %v758, %v1192
        %v1194 = vpop.f32.mrf.mxu0
        %1195 = vmatprep.mubr.bf16.mxu0 0
        %1196 = vmatmul.mubr.bf16.gmra.mxu0 %v1138
        %v1197 = vpop.f32.mrf.mxu0
        %v1198 = vadd.f32 %v758, %v1197
        %v1199 = vpop.f32.mrf.mxu0
        %v1200 = vpop.f32.mrf.mxu0
        %v1201 = vadd.f32 %v758, %v1200
        %v1202 = vpop.f32.mrf.mxu0
        %1203 = vdwg.mxu0
        %v1204 = vmax.f32 %v1174, 0.0
        %v1205 = vmax.f32 %v1177, 0.0
        %v1206 = vmax.f32 %v1182, 0.0
        %v1207 = vmax.f32 %v1185, 0.0
        %v1208 = vmax.f32 %v1190, 0.0
        %v1209 = vmax.f32 %v1193, 0.0
        %v1210 = vmax.f32 %v1198, 0.0
        %v1211 = vmax.f32 %v1201, 0.0
        %v1212 = vpack.c.bf16 %v1205, %v1204
        %v1213 = vpack.c.bf16 %v1207, %v1206
        %v1214 = vpack.c.bf16 %v1209, %v1208
        %v1215 = vpack.c.bf16 %v1211, %v1210
        %v1216 = vld [vmem:[#allocation8] sm:$0xf]
        %v1217 = vld [vmem:[#allocation8 + $0x4] sm:$0xf]
        %v1218 = vld [vmem:[#allocation8 + $0x8] sm:$0xf]
        %v1219 = vld [vmem:[#allocation8 + $0xc] sm:$0xf]
        %v1220 = vld [vmem:[#allocation8 + $0x10] sm:$0xf]
        %v1221 = vld [vmem:[#allocation8 + $0x14] sm:$0xf]
        %v1222 = vld [vmem:[#allocation8 + $0x18] sm:$0xf]
        %v1223 = vld [vmem:[#allocation8 + $0x1c] sm:$0xf]
        %v1224 = vld [vmem:[#allocation8 + $0x20] sm:$0xf]
        %v1225 = vld [vmem:[#allocation8 + $0x24] sm:$0xf]
        %v1226 = vld [vmem:[#allocation8 + $0x28] sm:$0xf]
        %v1227 = vld [vmem:[#allocation8 + $0x2c] sm:$0xf]
        %v1228 = vld [vmem:[#allocation8 + $0x30] sm:$0xf]
        %v1229 = vld [vmem:[#allocation8 + $0x34] sm:$0xf]
        %v1230 = vld [vmem:[#allocation8 + $0x38] sm:$0xf]
        %v1231 = vld [vmem:[#allocation8 + $0x3c] sm:$0xf]
        %v1248 = vunpack.c.l.b16 %v1216
        %v1249 = vunpack.c.l.b16 %v1217
        %v1250 = vunpack.c.l.b16 %v1218
        %v1251 = vunpack.c.l.b16 %v1219
        %v1252 = vunpack.c.l.b16 %v1220
        %v1253 = vunpack.c.l.b16 %v1221
        %v1254 = vunpack.c.l.b16 %v1222
        %v1255 = vunpack.c.l.b16 %v1223
        %v1256 = vunpack.c.l.b16 %v1224
        %v1257 = vunpack.c.l.b16 %v1225
        %v1258 = vunpack.c.l.b16 %v1226
        %v1259 = vunpack.c.l.b16 %v1227
        %v1260 = vunpack.c.l.b16 %v1228
        %v1261 = vunpack.c.l.b16 %v1229
        %v1262 = vunpack.c.l.b16 %v1230
        %v1263 = vunpack.c.l.b16 %v1231
        %v1264 = vpack.c.b16 %v1249, %v1248
        %v1265 = vpack.c.b16 %v1251, %v1250
        %v1266 = vpack.c.b16 %v1253, %v1252
        %v1267 = vpack.c.b16 %v1255, %v1254
        %v1268 = vpack.c.b16 %v1257, %v1256
        %v1269 = vpack.c.b16 %v1259, %v1258
        %v1270 = vpack.c.b16 %v1261, %v1260
        %v1271 = vpack.c.b16 %v1263, %v1262
        %1280 = vmatprep.subr.bf16.mxu0 0
        %1281 = vmatpush1.bf16.msra.mxu0 %v1271
        %1282 = vmatprep.subr.bf16.mxu0 0
        %1283 = vmatpush1.bf16.msra.mxu0 %v1270
        %1284 = vmatprep.subr.bf16.mxu0 0
        %1285 = vmatpush1.bf16.msra.mxu0 %v1269
        %1286 = vmatprep.subr.bf16.mxu0 0
        %1287 = vmatpush1.bf16.msra.mxu0 %v1268
        %1288 = vmatprep.subr.bf16.mxu0 0
        %1289 = vmatpush1.bf16.msra.mxu0 %v1267
        %1290 = vmatprep.subr.bf16.mxu0 0
        %1291 = vmatpush1.bf16.msra.mxu0 %v1266
        %1292 = vmatprep.subr.bf16.mxu0 0
        %1293 = vmatpush1.bf16.msra.mxu0 %v1265
        %1294 = vmatprep.subr.bf16.mxu0 0
        %1295 = vmatpush1.bf16.msra.mxu0 %v1264
        %1296 = vmatprep.subr.bf16.mxu0 0
        %1297 = vmatpush2.bf16.msra.mxu0 0
        %1298 = vmatprep.subr.bf16.mxu0 0
        %1299 = vmatpush2.bf16.msra.mxu0 0
        %1300 = vmatprep.subr.bf16.mxu0 0
        %1301 = vmatpush2.bf16.msra.mxu0 0
        %1302 = vmatprep.subr.bf16.mxu0 0
        %1303 = vmatpush2.bf16.msra.mxu0 0
        %1304 = vmatprep.subr.bf16.mxu0 0
        %1305 = vmatpush2.bf16.msra.mxu0 0
        %1306 = vmatprep.subr.bf16.mxu0 0
        %1307 = vmatpush2.bf16.msra.mxu0 0
        %1308 = vmatprep.subr.bf16.mxu0 0
        %1309 = vmatpush2.bf16.msra.mxu0 0
        %1310 = vmatprep.subr.bf16.mxu0 0
        %1311 = vmatpush2.bf16.msra.mxu0 0
        %1312 = vmatprep.mubr.bf16.mxu0 0
        %1313 = vmatmul.mubr.bf16.gmra.mxu0 %v1212
        %v1314 = vpop.f32.mrf.mxu0
        %v1315 = vadd.f32 %v690, %v1314
        %v1316 = vpop.f32.mrf.mxu0
        %v1317 = vpop.f32.mrf.mxu0
        %v1318 = vadd.f32 %v694, %v1317
        %v1319 = vpop.f32.mrf.mxu0
        %1320 = vmatprep.mubr.bf16.mxu0 0
        %1321 = vmatmul.mubr.bf16.gmra.mxu0 %v1213
        %v1322 = vpop.f32.mrf.mxu0
        %v1323 = vadd.f32 %v700, %v1322
        %v1324 = vpop.f32.mrf.mxu0
        %v1325 = vpop.f32.mrf.mxu0
        %v1326 = vadd.f32 %v704, %v1325
        %v1327 = vpop.f32.mrf.mxu0
        %1328 = vmatprep.mubr.bf16.mxu0 0
        %1329 = vmatmul.mubr.bf16.gmra.mxu0 %v1214
        %v1330 = vpop.f32.mrf.mxu0
        %v1331 = vadd.f32 %v710, %v1330
        %v1332 = vpop.f32.mrf.mxu0
        %v1333 = vpop.f32.mrf.mxu0
        %v1334 = vadd.f32 %v714, %v1333
        %v1335 = vpop.f32.mrf.mxu0
        %1336 = vmatprep.mubr.bf16.mxu0 0
        %1337 = vmatmul.mubr.bf16.gmra.mxu0 %v1215
        %v1338 = vpop.f32.mrf.mxu0
        %v1339 = vadd.f32 %v720, %v1338
        %v1340 = vpop.f32.mrf.mxu0
        %v1341 = vpop.f32.mrf.mxu0
        %v1342 = vadd.f32 %v724, %v1341
        %v1343 = vpop.f32.mrf.mxu0
        %1344 = vdwg.mxu0
        %v1345 = vadd.f32 %v1315, %v765
        %v1346 = vadd.f32 %v1318, %v765
        %v1347 = vadd.f32 %v1323, %v765
        %v1348 = vadd.f32 %v1326, %v765
        %v1349 = vadd.f32 %v1331, %v765
        %v1350 = vadd.f32 %v1334, %v765
        %v1351 = vadd.f32 %v1339, %v765
        %v1352 = vadd.f32 %v1342, %v765
        %v1353 = vmax.f32 %v1345, 0.0
        %v1354 = vmax.f32 %v1346, 0.0
        %v1355 = vmax.f32 %v1347, 0.0
        %v1356 = vmax.f32 %v1348, 0.0
        %v1357 = vmax.f32 %v1349, 0.0
        %v1358 = vmax.f32 %v1350, 0.0
        %v1359 = vmax.f32 %v1351, 0.0
        %v1360 = vmax.f32 %v1352, 0.0
        %v1361 = vpack.c.bf16 %v1354, %v1353
        %v1362 = vpack.c.bf16 %v1356, %v1355
        %v1363 = vpack.c.bf16 %v1358, %v1357
        %v1364 = vpack.c.bf16 %v1360, %v1359
        %1365 = vmatprep.subr.bf16.mxu0 0
        %1366 = vmatpush1.bf16.msra.mxu0 %v822
        %1367 = vmatprep.subr.bf16.mxu0 0
        %1368 = vmatpush1.bf16.msra.mxu0 %v821
        %1369 = vmatprep.subr.bf16.mxu0 0
        %1370 = vmatpush1.bf16.msra.mxu0 %v820
        %1371 = vmatprep.subr.bf16.mxu0 0
        %1372 = vmatpush1.bf16.msra.mxu0 %v819
        %1373 = vmatprep.subr.bf16.mxu0 0
        %1374 = vmatpush1.bf16.msra.mxu0 %v818
        %1375 = vmatprep.subr.bf16.mxu0 0
        %1376 = vmatpush1.bf16.msra.mxu0 %v817
        %1377 = vmatprep.subr.bf16.mxu0 0
        %1378 = vmatpush1.bf16.msra.mxu0 %v816
        %1379 = vmatprep.subr.bf16.mxu0 0
        %1380 = vmatpush1.bf16.msra.mxu0 %v815
        %1381 = vmatprep.subr.bf16.mxu0 0
        %1382 = vmatpush2.bf16.msra.mxu0 0
        %1383 = vmatprep.subr.bf16.mxu0 0
        %1384 = vmatpush2.bf16.msra.mxu0 0
        %1385 = vmatprep.subr.bf16.mxu0 0
        %1386 = vmatpush2.bf16.msra.mxu0 0
        %1387 = vmatprep.subr.bf16.mxu0 0
        %1388 = vmatpush2.bf16.msra.mxu0 0
        %1389 = vmatprep.subr.bf16.mxu0 0
        %1390 = vmatpush2.bf16.msra.mxu0 0
        %1391 = vmatprep.subr.bf16.mxu0 0
        %1392 = vmatpush2.bf16.msra.mxu0 0
        %1393 = vmatprep.subr.bf16.mxu0 0
        %1394 = vmatpush2.bf16.msra.mxu0 0
        %1395 = vmatprep.subr.bf16.mxu0 0
        %1396 = vmatpush2.bf16.msra.mxu0 0
        %1397 = vmatprep.mubr.bf16.mxu0 0
        %1398 = vmatmul.mubr.bf16.gmra.mxu0 %v1361
        %v1399 = vpop.f32.mrf.mxu0
        %v1400 = vadd.f32 %v758, %v1399
        %v1401 = vpop.f32.mrf.mxu0
        %v1402 = vpop.f32.mrf.mxu0
        %v1403 = vadd.f32 %v758, %v1402
        %v1404 = vpop.f32.mrf.mxu0
        %1405 = vmatprep.mubr.bf16.mxu0 0
        %1406 = vmatmul.mubr.bf16.gmra.mxu0 %v1362
        %v1407 = vpop.f32.mrf.mxu0
        %v1408 = vadd.f32 %v758, %v1407
        %v1409 = vpop.f32.mrf.mxu0
        %v1410 = vpop.f32.mrf.mxu0
        %v1411 = vadd.f32 %v758, %v1410
        %v1412 = vpop.f32.mrf.mxu0
        %1413 = vmatprep.mubr.bf16.mxu0 0
        %1414 = vmatmul.mubr.bf16.gmra.mxu0 %v1363
        %v1415 = vpop.f32.mrf.mxu0
        %v1416 = vadd.f32 %v758, %v1415
        %v1417 = vpop.f32.mrf.mxu0
        %v1418 = vpop.f32.mrf.mxu0
        %v1419 = vadd.f32 %v758, %v1418
        %v1420 = vpop.f32.mrf.mxu0
        %1421 = vmatprep.mubr.bf16.mxu0 0
        %1422 = vmatmul.mubr.bf16.gmra.mxu0 %v1364
        %v1423 = vpop.f32.mrf.mxu0
        %v1424 = vadd.f32 %v758, %v1423
        %v1425 = vpop.f32.mrf.mxu0
        %v1426 = vpop.f32.mrf.mxu0
        %v1427 = vadd.f32 %v758, %v1426
        %v1428 = vpop.f32.mrf.mxu0
        %1429 = vdwg.mxu0
        %v1430 = vmax.f32 %v1400, 0.0
        %v1431 = vmax.f32 %v1403, 0.0
        %v1432 = vmax.f32 %v1408, 0.0
        %v1433 = vmax.f32 %v1411, 0.0
        %v1434 = vmax.f32 %v1416, 0.0
        %v1435 = vmax.f32 %v1419, 0.0
        %v1436 = vmax.f32 %v1424, 0.0
        %v1437 = vmax.f32 %v1427, 0.0
        %v1438 = vpack.c.bf16 %v1431, %v1430
        %v1439 = vpack.c.bf16 %v1433, %v1432
        %v1440 = vpack.c.bf16 %v1435, %v1434
        %v1441 = vpack.c.bf16 %v1437, %v1436
        %1442 = vmatprep.subr.bf16.mxu0 0
        %1443 = vmatpush1.bf16.msra.mxu0 %v822
        %1444 = vmatprep.subr.bf16.mxu0 0
        %1445 = vmatpush1.bf16.msra.mxu0 %v821
        %1446 = vmatprep.subr.bf16.mxu0 0
        %1447 = vmatpush1.bf16.msra.mxu0 %v820
        %1448 = vmatprep.subr.bf16.mxu0 0
        %1449 = vmatpush1.bf16.msra.mxu0 %v819
        %1450 = vmatprep.subr.bf16.mxu0 0
        %1451 = vmatpush1.bf16.msra.mxu0 %v818
        %1452 = vmatprep.subr.bf16.mxu0 0
        %1453 = vmatpush1.bf16.msra.mxu0 %v817
        %1454 = vmatprep.subr.bf16.mxu0 0
        %1455 = vmatpush1.bf16.msra.mxu0 %v816
        %1456 = vmatprep.subr.bf16.mxu0 0
        %1457 = vmatpush1.bf16.msra.mxu0 %v815
        %1458 = vmatprep.subr.bf16.mxu0 0
        %1459 = vmatpush2.bf16.msra.mxu0 0
        %1460 = vmatprep.subr.bf16.mxu0 0
        %1461 = vmatpush2.bf16.msra.mxu0 0
        %1462 = vmatprep.subr.bf16.mxu0 0
        %1463 = vmatpush2.bf16.msra.mxu0 0
        %1464 = vmatprep.subr.bf16.mxu0 0
        %1465 = vmatpush2.bf16.msra.mxu0 0
        %1466 = vmatprep.subr.bf16.mxu0 0
        %1467 = vmatpush2.bf16.msra.mxu0 0
        %1468 = vmatprep.subr.bf16.mxu0 0
        %1469 = vmatpush2.bf16.msra.mxu0 0
        %1470 = vmatprep.subr.bf16.mxu0 0
        %1471 = vmatpush2.bf16.msra.mxu0 0
        %1472 = vmatprep.subr.bf16.mxu0 0
        %1473 = vmatpush2.bf16.msra.mxu0 0
        %1474 = vmatprep.mubr.bf16.mxu0 0
        %1475 = vmatmul.mubr.bf16.gmra.mxu0 %v1438
        %v1476 = vpop.f32.mrf.mxu0
        %v1477 = vadd.f32 %v758, %v1476
        %v1478 = vpop.f32.mrf.mxu0
        %v1479 = vpop.f32.mrf.mxu0
        %v1480 = vadd.f32 %v758, %v1479
        %v1481 = vpop.f32.mrf.mxu0
        %1482 = vmatprep.mubr.bf16.mxu0 0
        %1483 = vmatmul.mubr.bf16.gmra.mxu0 %v1439
        %v1484 = vpop.f32.mrf.mxu0
        %v1485 = vadd.f32 %v758, %v1484
        %v1486 = vpop.f32.mrf.mxu0
        %v1487 = vpop.f32.mrf.mxu0
        %v1488 = vadd.f32 %v758, %v1487
        %v1489 = vpop.f32.mrf.mxu0
        %1490 = vmatprep.mubr.bf16.mxu0 0
        %1491 = vmatmul.mubr.bf16.gmra.mxu0 %v1440
        %v1492 = vpop.f32.mrf.mxu0
        %v1493 = vadd.f32 %v758, %v1492
        %v1494 = vpop.f32.mrf.mxu0
        %v1495 = vpop.f32.mrf.mxu0
        %v1496 = vadd.f32 %v758, %v1495
        %v1497 = vpop.f32.mrf.mxu0
        %1498 = vmatprep.mubr.bf16.mxu0 0
        %1499 = vmatmul.mubr.bf16.gmra.mxu0 %v1441
        %v1500 = vpop.f32.mrf.mxu0
        %v1501 = vadd.f32 %v758, %v1500
        %v1502 = vpop.f32.mrf.mxu0
        %v1503 = vpop.f32.mrf.mxu0
        %v1504 = vadd.f32 %v758, %v1503
        %v1505 = vpop.f32.mrf.mxu0
        %1506 = vdwg.mxu0
        %v1507 = vmax.f32 %v1477, 0.0
        %v1508 = vmax.f32 %v1480, 0.0
        %v1509 = vmax.f32 %v1485, 0.0
        %v1510 = vmax.f32 %v1488, 0.0
        %v1511 = vmax.f32 %v1493, 0.0
        %v1512 = vmax.f32 %v1496, 0.0
        %v1513 = vmax.f32 %v1501, 0.0
        %v1514 = vmax.f32 %v1504, 0.0
        %v1515 = vpack.c.bf16 %v1508, %v1507
        %v1516 = vpack.c.bf16 %v1510, %v1509
        %v1517 = vpack.c.bf16 %v1512, %v1511
        %v1518 = vpack.c.bf16 %v1514, %v1513
        %1519 = vmatprep.subr.bf16.mxu0 0
        %1520 = vmatpush1.bf16.msra.mxu0 %v822
        %1521 = vmatprep.subr.bf16.mxu0 0
        %1522 = vmatpush1.bf16.msra.mxu0 %v821
        %1523 = vmatprep.subr.bf16.mxu0 0
        %1524 = vmatpush1.bf16.msra.mxu0 %v820
        %1525 = vmatprep.subr.bf16.mxu0 0
        %1526 = vmatpush1.bf16.msra.mxu0 %v819
        %1527 = vmatprep.subr.bf16.mxu0 0
        %1528 = vmatpush1.bf16.msra.mxu0 %v818
        %1529 = vmatprep.subr.bf16.mxu0 0
        %1530 = vmatpush1.bf16.msra.mxu0 %v817
        %1531 = vmatprep.subr.bf16.mxu0 0
        %1532 = vmatpush1.bf16.msra.mxu0 %v816
        %1533 = vmatprep.subr.bf16.mxu0 0
        %1534 = vmatpush1.bf16.msra.mxu0 %v815
        %1535 = vmatprep.subr.bf16.mxu0 0
        %1536 = vmatpush2.bf16.msra.mxu0 0
        %1537 = vmatprep.subr.bf16.mxu0 0
        %1538 = vmatpush2.bf16.msra.mxu0 0
        %1539 = vmatprep.subr.bf16.mxu0 0
        %1540 = vmatpush2.bf16.msra.mxu0 0
        %1541 = vmatprep.subr.bf16.mxu0 0
        %1542 = vmatpush2.bf16.msra.mxu0 0
        %1543 = vmatprep.subr.bf16.mxu0 0
        %1544 = vmatpush2.bf16.msra.mxu0 0
        %1545 = vmatprep.subr.bf16.mxu0 0
        %1546 = vmatpush2.bf16.msra.mxu0 0
        %1547 = vmatprep.subr.bf16.mxu0 0
        %1548 = vmatpush2.bf16.msra.mxu0 0
        %1549 = vmatprep.subr.bf16.mxu0 0
        %1550 = vmatpush2.bf16.msra.mxu0 0
        %1551 = vmatprep.mubr.bf16.mxu0 0
        %1552 = vmatmul.mubr.bf16.gmra.mxu0 %v1515
        %v1553 = vpop.f32.mrf.mxu0
        %v1554 = vadd.f32 %v758, %v1553
        %v1555 = vpop.f32.mrf.mxu0
        %v1556 = vpop.f32.mrf.mxu0
        %v1557 = vadd.f32 %v758, %v1556
        %v1558 = vpop.f32.mrf.mxu0
        %1559 = vmatprep.mubr.bf16.mxu0 0
        %1560 = vmatmul.mubr.bf16.gmra.mxu0 %v1516
        %v1561 = vpop.f32.mrf.mxu0
        %v1562 = vadd.f32 %v758, %v1561
        %v1563 = vpop.f32.mrf.mxu0
        %v1564 = vpop.f32.mrf.mxu0
        %v1565 = vadd.f32 %v758, %v1564
        %v1566 = vpop.f32.mrf.mxu0
        %1567 = vmatprep.mubr.bf16.mxu0 0
        %1568 = vmatmul.mubr.bf16.gmra.mxu0 %v1517
        %v1569 = vpop.f32.mrf.mxu0
        %v1570 = vadd.f32 %v758, %v1569
        %v1571 = vpop.f32.mrf.mxu0
        %v1572 = vpop.f32.mrf.mxu0
        %v1573 = vadd.f32 %v758, %v1572
        %v1574 = vpop.f32.mrf.mxu0
        %1575 = vmatprep.mubr.bf16.mxu0 0
        %1576 = vmatmul.mubr.bf16.gmra.mxu0 %v1518
        %v1577 = vpop.f32.mrf.mxu0
        %v1578 = vadd.f32 %v758, %v1577
        %v1579 = vpop.f32.mrf.mxu0
        %v1580 = vpop.f32.mrf.mxu0
        %v1581 = vadd.f32 %v758, %v1580
        %v1582 = vpop.f32.mrf.mxu0
        %1583 = vdwg.mxu0
        %v1584 = vmax.f32 %v1554, 0.0
        %v1585 = vmax.f32 %v1557, 0.0
        %v1586 = vmax.f32 %v1562, 0.0
        %v1587 = vmax.f32 %v1565, 0.0
        %v1588 = vmax.f32 %v1570, 0.0
        %v1589 = vmax.f32 %v1573, 0.0
        %v1590 = vmax.f32 %v1578, 0.0
        %v1591 = vmax.f32 %v1581, 0.0
        %v1592 = vpack.c.bf16 %v1585, %v1584
        %v1593 = vpack.c.bf16 %v1587, %v1586
        %v1594 = vpack.c.bf16 %v1589, %v1588
        %v1595 = vpack.c.bf16 %v1591, %v1590
        %v1596 = vld [vmem:[#allocation10] sm:$0xf]
        %v1597 = vld [vmem:[#allocation10 + $0x4] sm:$0xf]
        %v1598 = vld [vmem:[#allocation10 + $0x8] sm:$0xf]
        %v1599 = vld [vmem:[#allocation10 + $0xc] sm:$0xf]
        %v1600 = vld [vmem:[#allocation10 + $0x10] sm:$0xf]
        %v1601 = vld [vmem:[#allocation10 + $0x14] sm:$0xf]
        %v1602 = vld [vmem:[#allocation10 + $0x18] sm:$0xf]
        %v1603 = vld [vmem:[#allocation10 + $0x1c] sm:$0xf]
        %v1604 = vld [vmem:[#allocation10 + $0x20] sm:$0xf]
        %v1605 = vld [vmem:[#allocation10 + $0x24] sm:$0xf]
        %v1606 = vld [vmem:[#allocation10 + $0x28] sm:$0xf]
        %v1607 = vld [vmem:[#allocation10 + $0x2c] sm:$0xf]
        %v1608 = vld [vmem:[#allocation10 + $0x30] sm:$0xf]
        %v1609 = vld [vmem:[#allocation10 + $0x34] sm:$0xf]
        %v1610 = vld [vmem:[#allocation10 + $0x38] sm:$0xf]
        %v1611 = vld [vmem:[#allocation10 + $0x3c] sm:$0xf]
        %v1612 = vld [vmem:[%s8] sm:$0x1]
        %v1614 = vlaneseq
        %v1615 = vshrl.u32 %v1614, 7
        %v1616 = vsub.s32 0, %v1615
        %v1617 = vrot.slane %v1612, %v1616
        %v1635 = vunpack.c.l.b16 %v1596
        %v1636 = vunpack.c.l.b16 %v1597
        %v1637 = vunpack.c.l.b16 %v1598
        %v1638 = vunpack.c.l.b16 %v1599
        %v1639 = vunpack.c.l.b16 %v1600
        %v1640 = vunpack.c.l.b16 %v1601
        %v1641 = vunpack.c.l.b16 %v1602
        %v1642 = vunpack.c.l.b16 %v1603
        %v1643 = vunpack.c.l.b16 %v1604
        %v1644 = vunpack.c.l.b16 %v1605
        %v1645 = vunpack.c.l.b16 %v1606
        %v1646 = vunpack.c.l.b16 %v1607
        %v1647 = vunpack.c.l.b16 %v1608
        %v1648 = vunpack.c.l.b16 %v1609
        %v1649 = vunpack.c.l.b16 %v1610
        %v1650 = vunpack.c.l.b16 %v1611
        %v1651 = vpack.c.b16 %v1636, %v1635
        %v1652 = vpack.c.b16 %v1638, %v1637
        %v1653 = vpack.c.b16 %v1640, %v1639
        %v1654 = vpack.c.b16 %v1642, %v1641
        %v1655 = vpack.c.b16 %v1644, %v1643
        %v1656 = vpack.c.b16 %v1646, %v1645
        %v1657 = vpack.c.b16 %v1648, %v1647
        %v1658 = vpack.c.b16 %v1650, %v1649
        %1667 = vmatprep.subr.bf16.mxu0 0
        %1668 = vmatpush1.bf16.msra.mxu0 %v1658
        %1669 = vmatprep.subr.bf16.mxu0 0
        %1670 = vmatpush1.bf16.msra.mxu0 %v1657
        %1671 = vmatprep.subr.bf16.mxu0 0
        %1672 = vmatpush1.bf16.msra.mxu0 %v1656
        %1673 = vmatprep.subr.bf16.mxu0 0
        %1674 = vmatpush1.bf16.msra.mxu0 %v1655
        %1675 = vmatprep.subr.bf16.mxu0 0
        %1676 = vmatpush1.bf16.msra.mxu0 %v1654
        %1677 = vmatprep.subr.bf16.mxu0 0
        %1678 = vmatpush1.bf16.msra.mxu0 %v1653
        %1679 = vmatprep.subr.bf16.mxu0 0
        %1680 = vmatpush1.bf16.msra.mxu0 %v1652
        %1681 = vmatprep.subr.bf16.mxu0 0
        %1682 = vmatpush1.bf16.msra.mxu0 %v1651
        %1683 = vmatprep.subr.bf16.mxu0 0
        %1684 = vmatpush2.bf16.msra.mxu0 0
        %1685 = vmatprep.subr.bf16.mxu0 0
        %1686 = vmatpush2.bf16.msra.mxu0 0
        %1687 = vmatprep.subr.bf16.mxu0 0
        %1688 = vmatpush2.bf16.msra.mxu0 0
        %1689 = vmatprep.subr.bf16.mxu0 0
        %1690 = vmatpush2.bf16.msra.mxu0 0
        %1691 = vmatprep.subr.bf16.mxu0 0
        %1692 = vmatpush2.bf16.msra.mxu0 0
        %1693 = vmatprep.subr.bf16.mxu0 0
        %1694 = vmatpush2.bf16.msra.mxu0 0
        %1695 = vmatprep.subr.bf16.mxu0 0
        %1696 = vmatpush2.bf16.msra.mxu0 0
        %1697 = vmatprep.subr.bf16.mxu0 0
        %1698 = vmatpush2.bf16.msra.mxu0 0
        %1699 = vmatprep.mubr.bf16.mxu0 0
        %1700 = vmatmul.mubr.bf16.gmra.mxu0 %v1592
        %v1701 = vpop.f32.mrf.mxu0
        %v1702 = vadd.f32 %v1617, %v1701
        %v1703 = vpop.f32.mrf.mxu0
        %v1704 = vpop.f32.mrf.mxu0
        %v1705 = vadd.f32 %v1617, %v1704
        %v1706 = vpop.f32.mrf.mxu0
        %1707 = vmatprep.mubr.bf16.mxu0 0
        %1708 = vmatmul.mubr.bf16.gmra.mxu0 %v1593
        %v1709 = vpop.f32.mrf.mxu0
        %v1710 = vadd.f32 %v1617, %v1709
        %v1711 = vpop.f32.mrf.mxu0
        %v1712 = vpop.f32.mrf.mxu0
        %v1713 = vadd.f32 %v1617, %v1712
        %v1714 = vpop.f32.mrf.mxu0
        %1715 = vmatprep.mubr.bf16.mxu0 0
        %1716 = vmatmul.mubr.bf16.gmra.mxu0 %v1594
        %v1717 = vpop.f32.mrf.mxu0
        %v1718 = vadd.f32 %v1617, %v1717
        %v1719 = vpop.f32.mrf.mxu0
        %v1720 = vpop.f32.mrf.mxu0
        %v1721 = vadd.f32 %v1617, %v1720
        %v1722 = vpop.f32.mrf.mxu0
        %1723 = vmatprep.mubr.bf16.mxu0 0
        %1724 = vmatmul.mubr.bf16.gmra.mxu0 %v1595
        %v1725 = vpop.f32.mrf.mxu0
        %v1726 = vadd.f32 %v1617, %v1725
        %v1727 = vpop.f32.mrf.mxu0
        %v1728 = vpop.f32.mrf.mxu0
        %v1729 = vadd.f32 %v1617, %v1728
        %v1730 = vpop.f32.mrf.mxu0
        %1731 = vdwg.mxu0
        %1732 = vst [vmem:[%s409] sm:$0xff] %v1702
        %1733 = vst [vmem:[%s409 + $0x8] sm:$0xff] %v1705
        %1734 = vst [vmem:[%s409 + $0x10] sm:$0xff] %v1710
        %1735 = vst [vmem:[%s409 + $0x18] sm:$0xff] %v1713
        %1736 = vst [vmem:[%s409 + $0x20] sm:$0xff] %v1718
        %1737 = vst [vmem:[%s409 + $0x28] sm:$0xff] %v1721
        %1738 = vst [vmem:[%s409 + $0x30] sm:$0xff] %v1726
        %1739 = vst [vmem:[%s409 + $0x38] sm:$0xff] %v1729
        %s1740 = sand.u32 %s230, 1
        %s1741 = scalar_lea.sflag [#allocation4], %s1740
        %s1742 = sand.u32 %s230, 1
        %s1743 = smul.addr %s1742, 64
        %s1744 = scalar_lea.vmem [#allocation11], %s1743
        // Predicated region
        $region77: #{tpu_custom_call.1} parent=55 // pred_check
          %p1745 = pneg %p240
        $region78: #{tpu_custom_call.1} parent=55 // pred_check_branch
          %1747 = sbr.rel (%p1745) target = $region80
        $region79: #{tpu_custom_call.1} parent=55 // pred_region
          %s1748 = smul.u32 8, %s28
          %s1750 = ssub.s32 1024, 1024
          %1751 = vsyncadd %s1741, %s1750
          %s1752 = smul.addr %s1748, 128
          %s1753 = scalar_lea.hbm %s9, %s1752
          %s1754 = sshll.u32 %s1744, 4
          %s1755 = int_to_ptr.vmem [resolvable:$true] %s1754
          %1760 = dma.vmem_to_hbm [thread:$0]  %s1755, 1024, %s1753, %s1741, 128, 128, 8
        $region80: #{tpu_custom_call.1} parent=55 // pred_fallthru
          _
      $region56: #{tpu_custom_call.1} parent=5 // pred_fallthru
        _
      %p1761 = scmp.le.s32.totalorder 2, %s23
      // Predicated region
      $region81: #{tpu_custom_call.1} parent=5 // pred_check
        %p1762 = pneg %p1761
      $region82: #{tpu_custom_call.1} parent=5 // pred_check_branch
        %1764 = sbr.rel (%p1762) target = $region84
      $region83: #{tpu_custom_call.1} parent=5 // pred_region
        %s1765 = ssub.s32 %s23, 2
        // Predicated region
        $region85: #{tpu_custom_call.1} parent=83 // pred_check
          %p1766 = pneg %p246
        $region86: #{tpu_custom_call.1} parent=83 // pred_check_branch
          %1768 = sbr.rel (%p1766) target = $region88
        $region87: #{tpu_custom_call.1} parent=83 // pred_region
          %s1769 = sand.u32 %s231, 1
          %s1770 = scalar_lea.sflag [#allocation4], %s1769
          %s1771 = sand.u32 %s231, 1
          %s1772 = smul.addr %s1771, 64
          %s1773 = scalar_lea.vmem [#allocation11], %s1772
          %1774 = dma.done %s1770, 1024
        $region88: #{tpu_custom_call.1} parent=83 // pred_fallthru
          _
      $region84: #{tpu_custom_call.1} parent=5 // pred_fallthru
        _
    $region6: #{tpu_custom_call.1} parent=1 // loop_footer
      %s27 = sadd.s32 1, %s23
    $region7: #{tpu_custom_call.1} parent=1 // loop_footer_branch
      %22 = sbr.rel target = $region3
    $region8: #{tpu_custom_call.1} parent=1 // loop_exit
      _
    %1775 = vsyncpa [#allocation3], 1
    %s1776 = scalar_lea.sflag [#allocation3], 1
    %1777 = vsyncpa %s1776, 1
    %1778 = vsyncpa [#allocation6], 1
    %1779 = vsyncpa [#allocation9], 1
    %1780 = vsyncpa [#allocation4], 1
    %s1781 = scalar_lea.sflag [#allocation4], 1
    %1782 = vsyncpa %s1781, 1

</llo_original>
